<compile_context>
chip_gen: v7x
topology: tpu7x:2x2x1
jax: 0.10.0
libtpu: 0.0.40
codegen_flags: <defaults>
</compile_context>

<pallas_src>
import math
import functools

import jax
import jax.numpy as jnp
from jax import lax
from jax.experimental import pallas as pl
from jax.experimental.pallas import tpu as pltpu


# ----------------------------- small math helpers -----------------------------

def _layernorm(z, g, b, eps=1e-5):
    # f32 statistics (z, g, b are f32).
    mu = jnp.mean(z, axis=-1, keepdims=True)
    var = jnp.mean((z - mu) ** 2, axis=-1, keepdims=True)
    return (z - mu) * lax.rsqrt(var + eps) * g + b


def _erf(x):
    # Abramowitz & Stegun 7.1.26 polynomial (|err| < 1.5e-7), built only from ops
    # guaranteed to lower in Mosaic (exp / mul / where).  The inner divide goes
    # through the EUP via pl.reciprocal instead of the VALU divide path.
    a1, a2, a3, a4, a5 = 0.254829592, -0.284496736, 1.421413741, -1.453152027, 1.061405429
    p = 0.3275911
    sgn = jnp.where(x >= 0, 1.0, -1.0)
    z = jnp.abs(x)
    t = pl.reciprocal(1.0 + p * z, approx=True)
    poly = t * (a1 + t * (a2 + t * (a3 + t * (a4 + t * a5))))
    return sgn * (1.0 - poly * jnp.exp(-z * z))


def _gelu_exact(x):
    # PyTorch nn.GELU default = exact erf form (not the tanh approximation).
    # TODO(synk): on v6e/v7x this polynomial could run in packed bf16 (or use the
    # tanh approximation) for ~2x VPU throughput; kept f32 exact for fidelity.
    return 0.5 * x * (1.0 + _erf(x * 0.7071067811865476))


# --------------------------------- the kernel ---------------------------------

def encoder_pool_kernel(
    x_ref, mkeys_ref, mpool_ref,
    wq_ref, bq_ref, wk_ref, bk_ref, wv_ref, bv_ref, wo_ref, bo_ref,
    g1_ref, be1_ref,
    w1_ref, bf1_ref, w2_ref, bf2_ref,
    g2_ref, be2_ref,
    out_ref,
    ctx_scr, h1_scr,
    *, num_heads: int, heads_per_group: int,
):
    Bt, S, D = x_ref.shape          # one grid step == one batch tile of Bt sequences
    H = num_heads
    Dh = D // H
    hg = heads_per_group
    gw = hg * Dh                    # head-group column width (<= 128 lanes)
    n_groups = H // hg

    x2b = x_ref[...].reshape(Bt * S, D)            # bf16; leading-dim reshape only
    m_keys = mkeys_ref[...].astype(jnp.float32)    # (Bt, 1, S)  1 = valid, 0 = pad
    neg_bias = (m_keys - 1.0) * 1e9                # additive key-padding bias (f32)
    # NOTE: a fully padded sequence gives a uniform softmax over masked keys; it
    # is zeroed again by the masked-mean pooling below.

    # ---- attention: per head-group projections keep only (Bt,S,gw) live; the
    # per-head context goes into a bf16 VMEM scratch; Wo is one full-K matmul.
    # (1/sqrt(Dh) is folded into wq/bq in the wrapper.)
    for g in range(n_groups):                      # static unroll over head groups
        c0 = g * gw

        def proj(w_ref, b_ref, _c0=c0):
            return (jnp.dot(x2b, w_ref[:, _c0:_c0 + gw],
                            preferred_element_type=jnp.float32)
                    + b_ref[:, _c0:_c0 + gw])

        q_g = proj(wq_ref, bq_ref).reshape(Bt, S, gw).astype(jnp.bfloat16)
        k_g = proj(wk_ref, bk_ref).reshape(Bt, S, gw).astype(jnp.bfloat16)
        v_g = proj(wv_ref, bv_ref).reshape(Bt, S, gw).astype(jnp.bfloat16)

        ctx_heads = []
        for hh in range(hg):                       # static per-head softmax attention
            sl = slice(hh * Dh, (hh + 1) * Dh)
            qh, kh, vh = q_g[:, :, sl], k_g[:, :, sl], v_g[:, :, sl]
            # Batched einsums contracting the LAST axes (no .T / XLU transpose).
            s = jnp.einsum('bqd,bkd->bqk', qh, kh,
                           preferred_element_type=jnp.float32)     # (Bt,S,S) f32
            s = s + neg_bias
            s = s - jnp.max(s, axis=-1, keepdims=True)
            p = jnp.exp(s)
            p = p * pl.reciprocal(jnp.sum(p, axis=-1, keepdims=True), approx=True)
            ctx_heads.append(
                jnp.einsum('bqk,bkd->bqd', p.astype(jnp.bfloat16), vh,
                           preferred_element_type=jnp.float32))     # (Bt,S,Dh) f32
        ctx_g = ctx_heads[0] if hg == 1 else jnp.concatenate(ctx_heads, axis=-1)
        ctx_scr[:, c0:c0 + gw] = ctx_g.reshape(Bt * S, gw).astype(jnp.bfloat16)

    # One (Bt*S, D) @ (D, D) Wo matmul: K accumulates inside the MXU.
    attn = (jnp.dot(ctx_scr[...], wo_ref[...], preferred_element_type=jnp.float32)
            + bo_ref[...])
    h1 = _layernorm(x2b.astype(jnp.float32) + attn, g1_ref[...], be1_ref[...])
    h1_scr[...] = h1.reshape(Bt, S, D)                              # (Bt,S,D) f32

    # ---- FFN + LN2 + masked-mean pooling, row-chunked one sequence at a time.
    # Bounds the f32 FFN hidden to (S, F) instead of (Bt*S, F).
    @pl.loop(0, Bt)
    def _(i):
        h1_i = h1_scr[i]                                            # (S, D) f32
        ff = jnp.dot(h1_i.astype(jnp.bfloat16), w1_ref[...],
                     preferred_element_type=jnp.float32) + bf1_ref[...]
        ff = _gelu_exact(ff)
        ff = jnp.dot(ff.astype(jnp.bfloat16), w2_ref[...],
                     preferred_element_type=jnp.float32) + bf2_ref[...]
        h2 = _layernorm(h1_i + ff, g2_ref[...], be2_ref[...])       # (S, D) f32

        # Masked mean pooling: VPU multiply + sublane sum (no M=1 matmul).
        m_col = mpool_ref[i].astype(jnp.float32)                    # (S, 1)
        pooled = jnp.sum(h2 * m_col, axis=0, keepdims=True)         # (1, D)
        denom = jnp.maximum(jnp.sum(m_col, axis=0, keepdims=True), 1e-9)
        out_ref[i] = (pooled * pl.reciprocal(denom, approx=True)).astype(out_ref.dtype)


# --------------------------------- the wrapper ---------------------------------

def _heads_per_group(num_heads, head_dim):
    """Largest divisor of num_heads whose packed width (d*head_dim) fits 128 lanes."""
    best = 1
    for d in range(1, num_heads + 1):
        if num_heads % d == 0 and d * head_dim <= 128:
            best = d
    return best


def _vmem_budget_bytes():
    """Generation-aware VMEM budget (v7x has 64 MiB physical; v5e/v6e have 128)."""
    try:
        cap = int(pltpu.get_tpu_info().vmem_capacity_bytes)
    except Exception:
        cap = 128 * 1024 * 1024
    return int(min(cap * 3 // 4, 100 * 1024 * 1024))


def _choose_batch_tile(B, S, D, F, vmem_budget):
    """Pick the batch tile Bt: fit the estimated live footprint in the VMEM budget
    and keep >= 2 grid steps when possible (both v7x TensorCores get work)."""
    bf16, f32 = 2, 4

    def footprint(bt):
        act = (2 * bt * S * D * bf16              # x block, double-buffered
               + bt * S * D * bf16                # attention context scratch
               + 2 * bt * S * D * f32             # h1 scratch + attn/LN transient
               + bt * S * S * f32                 # per-head score tensor
               + 3 * bt * S * min(D, 128) * bf16  # q/k/v of one head group
               + 2 * S * F * f32)                 # FFN hidden chunk (+ gelu temps)
        wts = (4 * D * D + 2 * D * F) * bf16      # resident bf16 weights
        return act + wts

    divisors = [d for d in range(1, B + 1) if B % d == 0]
    fitting = [d for d in divisors if footprint(d) <= vmem_budget] or [1]
    multi = [d for d in fitting if B // d >= 2] or fitting
    return max(multi)


def _const_block_spec(shape, single_buffer):
    """Grid-invariant (weight) BlockSpec; request single-buffering when available
    (double-buffering a constant block is pure VMEM waste at roberta-base sizes)."""
    ndim = len(shape)
    index_map = lambda b, _n=ndim: (0,) * _n
    if single_buffer and hasattr(pl, "Buffered"):
        try:
            return pl.BlockSpec(shape, index_map, pipeline_mode=pl.Buffered(1))
        except TypeError:        # pipeline_mode kwarg not supported on this jax
            pass
    return pl.BlockSpec(shape, index_map)


def sentence_transformer_forward(token_ids, attn_mask, params, *, num_heads,
                                 batch_tile=None, single_buffer_weights=True):
    """token_ids: [B, S] int32; attn_mask: [B, S] -> [B, D] sentence embeddings."""
    B, S = token_ids.shape
    D = params["tok_emb"].shape[1]
    F = params["w1"].shape[1]
    assert D % num_heads == 0
    assert S % 8 == 0, "pad sequences to a multiple of 8 (sublane) before the kernel"
    Dh = D // num_heads
    scale = 1.0 / math.sqrt(Dh)

    # Glue: embedding lookup + learned positional embeddings (plain JAX).
    x = jnp.take(params["tok_emb"], token_ids, axis=0) + params["pos_emb"][:S][None, :, :]
    x = x.astype(jnp.bfloat16)                                   # stream x as bf16
    mask_keys = attn_mask.astype(jnp.float32).reshape(B, 1, S)   # key-padding bias
    mask_pool = attn_mask.astype(jnp.float32).reshape(B, S, 1)   # pooling weights

    vmem_budget = _vmem_budget_bytes()
    bt = batch_tile or _choose_batch_tile(B, S, D, F, vmem_budget)
    assert B % bt == 0
    grid = (B // bt,)

    # bf16 for the MXU-facing weights; biases / LN params stay f32.
    # The 1/sqrt(Dh) softmax scale is folded into wq AND bq (Q = (xW+b)*scale).
    wdt = jnp.bfloat16
    weights = (
        (params["wq"] * scale).astype(wdt), params["bq"] * scale,
        params["wk"].astype(wdt), params["bk"],
        params["wv"].astype(wdt), params["bv"],
        params["wo"].astype(wdt), params["bo"],
        params["g1"], params["be1"],
        params["w1"].astype(wdt), params["bf1"],
        params["w2"].astype(wdt), params["bf2"],
        params["g2"], params["be2"],
    )

    kernel = functools.partial(
        encoder_pool_kernel,
        num_heads=num_heads,
        heads_per_group=_heads_per_group(num_heads, Dh))

    cost = pl.CostEstimate(
        flops=int(2 * B * S * (4 * D * D + 2 * D * F) + 4 * B * S * S * D + 2 * B * S * D),
        transcendentals=int(B * num_heads * S * S + B * S * F),
        bytes_accessed=int(x.size * 2 + mask_keys.size * 4 + mask_pool.size * 4
                           + B * D * 4
                           + sum(int(w.size) * w.dtype.itemsize for w in weights)),
    )

    def build(single_buf):
        wspecs = [_const_block_spec(tuple(w.shape), single_buf) for w in weights]
        return pl.pallas_call(
            kernel,
            out_shape=jax.ShapeDtypeStruct((B, 1, D), jnp.float32),
            grid_spec=pltpu.PrefetchScalarGridSpec(
                num_scalar_prefetch=0,
                grid=grid,
                in_specs=[
                    pl.BlockSpec((bt, S, D), lambda b: (b, 0, 0)),   # x batch tile (bf16)
                    pl.BlockSpec((bt, 1, S), lambda b: (b, 0, 0)),   # mask (key bias)
                    pl.BlockSpec((bt, S, 1), lambda b: (b, 0, 0)),   # mask (pooling)
                ] + wspecs,
                out_specs=pl.BlockSpec((bt, 1, D), lambda b: (b, 0, 0)),
                scratch_shapes=[
                    pltpu.VMEM((bt * S, D), jnp.bfloat16),   # attention context
                    pltpu.VMEM((bt, S, D), jnp.float32),     # h1 (post-LN1)
                ],
            ),
            compiler_params=pltpu.CompilerParams(
                # "parallel" lets the batch grid axis shard across v7x's 2 TCs.
                dimension_semantics=("parallel",),
                vmem_limit_bytes=int(vmem_budget),
            ),
            cost_estimate=cost,
        )

    try:
        out = build(single_buffer_weights)(x, mask_keys, mask_pool, *weights)
    except (TypeError, ValueError, NotImplementedError, pltpu.LoweringException):
        if not single_buffer_weights:
            raise
        # pl.Buffered(1) single-buffering rejected on this jax/backend: retry with
        # default double-buffered weight specs (a real error re-raises here).
        out = build(False)(x, mask_keys, mask_pool, *weights)
    return out.reshape(B, D)


def init_params(key, vocab, max_seq, D, F):
    ks = jax.random.split(key, 8)
    s = 0.02
    return {
        "tok_emb": s * jax.random.normal(ks[0], (vocab, D), jnp.float32),
        "pos_emb": s * jax.random.normal(ks[1], (max_seq, D), jnp.float32),
        "wq": s * jax.random.normal(ks[2], (D, D), jnp.float32),
        "wk": s * jax.random.normal(ks[3], (D, D), jnp.float32),
        "wv": s * jax.random.normal(ks[4], (D, D), jnp.float32),
        "wo": s * jax.random.normal(ks[5], (D, D), jnp.float32),
        "bq": jnp.zeros((1, D), jnp.float32),
        "bk": jnp.zeros((1, D), jnp.float32),
        "bv": jnp.zeros((1, D), jnp.float32),
        "bo": jnp.zeros((1, D), jnp.float32),
        "g1": jnp.ones((1, D), jnp.float32),
        "be1": jnp.zeros((1, D), jnp.float32),
        "w1": s * jax.random.normal(ks[6], (D, F), jnp.float32),
        "bf1": jnp.zeros((1, F), jnp.float32),
        "w2": s * jax.random.normal(ks[7], (F, D), jnp.float32),
        "bf2": jnp.zeros((1, D), jnp.float32),
        "g2": jnp.ones((1, D), jnp.float32),
        "be2": jnp.zeros((1, D), jnp.float32),
    }


if __name__ == "__main__":
    B, S, D, H, F, V = 2, 8, 32, 2, 64, 100

    key = jax.random.PRNGKey(0)
    k_param, k_tok = jax.random.split(key)
    params = init_params(k_param, vocab=V, max_seq=S, D=D, F=F)

    token_ids = jax.random.randint(k_tok, (B, S), 0, V, dtype=jnp.int32)
    # second sequence has 3 padded positions
    attn_mask = jnp.array(
        [[1, 1, 1, 1, 1, 1, 1, 1],
         [1, 1, 1, 1, 1, 0, 0, 0]], dtype=jnp.float32)

    sent_emb = sentence_transformer_forward(token_ids, attn_mask, params, num_heads=H)
    sent_emb = jax.block_until_ready(sent_emb)

    assert sent_emb.shape == (B, D)
    assert bool(jnp.all(jnp.isfinite(sent_emb)))
    print("KERNEL_OK")
</pallas_src>

<mosaic_0001>
module attributes {stable_mosaic.version = 11 : i64} {
  func.func @encoder_pool_kernel(%arg0: i32, %arg1: memref<1x8x32xbf16, #tpu.memory_space<vmem>>, %arg2: memref<1x1x8xf32, #tpu.memory_space<vmem>>, %arg3: memref<1x8x1xf32, #tpu.memory_space<vmem>>, %arg4: memref<32x32xbf16, #tpu.memory_space<vmem>>, %arg5: memref<1x32xf32, #tpu.memory_space<vmem>>, %arg6: memref<32x32xbf16, #tpu.memory_space<vmem>>, %arg7: memref<1x32xf32, #tpu.memory_space<vmem>>, %arg8: memref<32x32xbf16, #tpu.memory_space<vmem>>, %arg9: memref<1x32xf32, #tpu.memory_space<vmem>>, %arg10: memref<32x32xbf16, #tpu.memory_space<vmem>>, %arg11: memref<1x32xf32, #tpu.memory_space<vmem>>, %arg12: memref<1x32xf32, #tpu.memory_space<vmem>>, %arg13: memref<1x32xf32, #tpu.memory_space<vmem>>, %arg14: memref<32x64xbf16, #tpu.memory_space<vmem>>, %arg15: memref<1x64xf32, #tpu.memory_space<vmem>>, %arg16: memref<64x32xbf16, #tpu.memory_space<vmem>>, %arg17: memref<1x32xf32, #tpu.memory_space<vmem>>, %arg18: memref<1x32xf32, #tpu.memory_space<vmem>>, %arg19: memref<1x32xf32, #tpu.memory_space<vmem>>, %arg20: memref<1x1x32xf32, #tpu.memory_space<vmem>>, %arg21: memref<8x32xbf16, #tpu.memory_space<vmem>>, %arg22: memref<1x8x32xf32, #tpu.memory_space<vmem>>) attributes {dimension_semantics = [#tpu.dimension_semantics<parallel>], iteration_bounds = array<i64: 2>, scalar_prefetch = 0 : i64, scratch_operands = 2 : i64, tpu.core_type = #tpu.core_type<tc>, window_params = [{transform_indices = @transform_0, window_bounds = array<i64: 1, 8, 32>}, {transform_indices = @transform_1, window_bounds = array<i64: 1, 1, 8>}, {transform_indices = @transform_2, window_bounds = array<i64: 1, 8, 1>}, {pipeline_mode = #tpu.pipeline_mode<synchronous>, transform_indices = @transform_3, window_bounds = array<i64: 32, 32>}, {pipeline_mode = #tpu.pipeline_mode<synchronous>, transform_indices = @transform_4, window_bounds = array<i64: 1, 32>}, {pipeline_mode = #tpu.pipeline_mode<synchronous>, transform_indices = @transform_5, window_bounds = array<i64: 32, 32>}, {pipeline_mode = #tpu.pipeline_mode<synchronous>, transform_indices = @transform_6, window_bounds = array<i64: 1, 32>}, {pipeline_mode = #tpu.pipeline_mode<synchronous>, transform_indices = @transform_7, window_bounds = array<i64: 32, 32>}, {pipeline_mode = #tpu.pipeline_mode<synchronous>, transform_indices = @transform_8, window_bounds = array<i64: 1, 32>}, {pipeline_mode = #tpu.pipeline_mode<synchronous>, transform_indices = @transform_9, window_bounds = array<i64: 32, 32>}, {pipeline_mode = #tpu.pipeline_mode<synchronous>, transform_indices = @transform_10, window_bounds = array<i64: 1, 32>}, {pipeline_mode = #tpu.pipeline_mode<synchronous>, transform_indices = @transform_11, window_bounds = array<i64: 1, 32>}, {pipeline_mode = #tpu.pipeline_mode<synchronous>, transform_indices = @transform_12, window_bounds = array<i64: 1, 32>}, {pipeline_mode = #tpu.pipeline_mode<synchronous>, transform_indices = @transform_13, window_bounds = array<i64: 32, 64>}, {pipeline_mode = #tpu.pipeline_mode<synchronous>, transform_indices = @transform_14, window_bounds = array<i64: 1, 64>}, {pipeline_mode = #tpu.pipeline_mode<synchronous>, transform_indices = @transform_15, window_bounds = array<i64: 64, 32>}, {pipeline_mode = #tpu.pipeline_mode<synchronous>, transform_indices = @transform_16, window_bounds = array<i64: 1, 32>}, {pipeline_mode = #tpu.pipeline_mode<synchronous>, transform_indices = @transform_17, window_bounds = array<i64: 1, 32>}, {pipeline_mode = #tpu.pipeline_mode<synchronous>, transform_indices = @transform_18, window_bounds = array<i64: 1, 32>}, {transform_indices = @transform_19, window_bounds = array<i64: 1, 1, 32>}]} {
    %c0 = arith.constant 0 : index
    %c0_0 = arith.constant 0 : index
    %c0_1 = arith.constant 0 : index
    %0 = vector.load %arg1[%c0, %c0_0, %c0_1] : memref<1x8x32xbf16, #tpu.memory_space<vmem>>, vector<1x8x32xbf16>
    %1 = vector.shape_cast %0 : vector<1x8x32xbf16> to vector<8x32xbf16>
    %c0_2 = arith.constant 0 : index
    %c0_3 = arith.constant 0 : index
    %c0_4 = arith.constant 0 : index
    %2 = vector.load %arg2[%c0_2, %c0_3, %c0_4] : memref<1x1x8xf32, #tpu.memory_space<vmem>>, vector<1x1x8xf32>
    %cst = arith.constant 1.000000e+00 : f32
    %3 = vector.broadcast %cst : f32 to vector<1x1x8xf32>
    %4 = arith.subf %2, %3 : vector<1x1x8xf32>
    %cst_5 = arith.constant 1.000000e+09 : f32
    %5 = vector.broadcast %cst_5 : f32 to vector<1x1x8xf32>
    %6 = arith.mulf %4, %5 : vector<1x1x8xf32>
    %c0_6 = arith.constant 0 : index
    %c0_7 = arith.constant 0 : index
    %7 = vector.load %arg4[%c0_6, %c0_7] : memref<32x32xbf16, #tpu.memory_space<vmem>>, vector<32x32xbf16>
    %cst_8 = arith.constant dense<0.000000e+00> : vector<8x32xf32>
    %8 = tpu.matmul %1, %7, %cst_8 {dimension_numbers = #tpu.dot_dimension_numbers<[1], [0], [0], [1], [0, 0, 1, 1], [], []>} : vector<8x32xbf16>, vector<32x32xbf16>, vector<8x32xf32> -> vector<8x32xf32>
    %c0_9 = arith.constant 0 : index
    %c0_10 = arith.constant 0 : index
    %9 = vector.load %arg5[%c0_9, %c0_10] : memref<1x32xf32, #tpu.memory_space<vmem>>, vector<1x32xf32>
    %10 = vector.broadcast %9 : vector<1x32xf32> to vector<8x32xf32>
    %11 = arith.addf %8, %10 : vector<8x32xf32>
    %12 = vector.shape_cast %11 : vector<8x32xf32> to vector<1x8x32xf32>
    %13 = arith.truncf %12 : vector<1x8x32xf32> to vector<1x8x32xbf16>
    %c0_11 = arith.constant 0 : index
    %c0_12 = arith.constant 0 : index
    %14 = vector.load %arg6[%c0_11, %c0_12] : memref<32x32xbf16, #tpu.memory_space<vmem>>, vector<32x32xbf16>
    %cst_13 = arith.constant dense<0.000000e+00> : vector<8x32xf32>
    %15 = tpu.matmul %1, %14, %cst_13 {dimension_numbers = #tpu.dot_dimension_numbers<[1], [0], [0], [1], [0, 0, 1, 1], [], []>} : vector<8x32xbf16>, vector<32x32xbf16>, vector<8x32xf32> -> vector<8x32xf32>
    %c0_14 = arith.constant 0 : index
    %c0_15 = arith.constant 0 : index
    %16 = vector.load %arg7[%c0_14, %c0_15] : memref<1x32xf32, #tpu.memory_space<vmem>>, vector<1x32xf32>
    %17 = vector.broadcast %16 : vector<1x32xf32> to vector<8x32xf32>
    %18 = arith.addf %15, %17 : vector<8x32xf32>
    %19 = vector.shape_cast %18 : vector<8x32xf32> to vector<1x8x32xf32>
    %20 = arith.truncf %19 : vector<1x8x32xf32> to vector<1x8x32xbf16>
    %c0_16 = arith.constant 0 : index
    %c0_17 = arith.constant 0 : index
    %21 = vector.load %arg8[%c0_16, %c0_17] : memref<32x32xbf16, #tpu.memory_space<vmem>>, vector<32x32xbf16>
    %cst_18 = arith.constant dense<0.000000e+00> : vector<8x32xf32>
    %22 = tpu.matmul %1, %21, %cst_18 {dimension_numbers = #tpu.dot_dimension_numbers<[1], [0], [0], [1], [0, 0, 1, 1], [], []>} : vector<8x32xbf16>, vector<32x32xbf16>, vector<8x32xf32> -> vector<8x32xf32>
    %c0_19 = arith.constant 0 : index
    %c0_20 = arith.constant 0 : index
    %23 = vector.load %arg9[%c0_19, %c0_20] : memref<1x32xf32, #tpu.memory_space<vmem>>, vector<1x32xf32>
    %24 = vector.broadcast %23 : vector<1x32xf32> to vector<8x32xf32>
    %25 = arith.addf %22, %24 : vector<8x32xf32>
    %26 = vector.shape_cast %25 : vector<8x32xf32> to vector<1x8x32xf32>
    %27 = arith.truncf %26 : vector<1x8x32xf32> to vector<1x8x32xbf16>
    %28 = vector.extract_strided_slice %13 {offsets = [0, 0, 0], sizes = [1, 8, 16], strides = [1, 1, 1]} : vector<1x8x32xbf16> to vector<1x8x16xbf16>
    %29 = vector.extract_strided_slice %20 {offsets = [0, 0, 0], sizes = [1, 8, 16], strides = [1, 1, 1]} : vector<1x8x32xbf16> to vector<1x8x16xbf16>
    %30 = vector.extract_strided_slice %27 {offsets = [0, 0, 0], sizes = [1, 8, 16], strides = [1, 1, 1]} : vector<1x8x32xbf16> to vector<1x8x16xbf16>
    "tpu.trace_start"() <{level = 10 : i32, message = "bqd,bkd->bqk"}> : () -> ()
    %cst_21 = arith.constant dense<0.000000e+00> : vector<1x8x8xf32>
    %31 = tpu.matmul %28, %29, %cst_21 {dimension_numbers = #tpu.dot_dimension_numbers<[2], [2], [1], [1], [0, 0, 0, 1, 1, 1], [0], [0]>} : vector<1x8x16xbf16>, vector<1x8x16xbf16>, vector<1x8x8xf32> -> vector<1x8x8xf32>
    "tpu.trace_stop"() : () -> ()
    %32 = vector.broadcast %6 : vector<1x1x8xf32> to vector<1x8x8xf32>
    %33 = arith.addf %31, %32 : vector<1x8x8xf32>
    %cst_22 = arith.constant dense<0xFF800000> : vector<1x8xf32>
    %34 = vector.multi_reduction <maximumf>, %33, %cst_22 [2] : vector<1x8x8xf32> to vector<1x8xf32>
    %35 = vector.shape_cast %34 : vector<1x8xf32> to vector<1x8x1xf32>
    %36 = vector.broadcast %35 : vector<1x8x1xf32> to vector<1x8x8xf32>
    %37 = arith.subf %33, %36 : vector<1x8x8xf32>
    %38 = math.exp %37 : vector<1x8x8xf32>
    %cst_23 = arith.constant dense<0.000000e+00> : vector<1x8xf32>
    %39 = vector.multi_reduction <add>, %38, %cst_23 [2] : vector<1x8x8xf32> to vector<1x8xf32>
    %40 = vector.shape_cast %39 : vector<1x8xf32> to vector<1x8x1xf32>
    %41 = tpu.reciprocal %40 {approx = true} : vector<1x8x1xf32> -> vector<1x8x1xf32>
    %42 = vector.broadcast %41 : vector<1x8x1xf32> to vector<1x8x8xf32>
    %43 = arith.mulf %38, %42 : vector<1x8x8xf32>
    %44 = arith.truncf %43 : vector<1x8x8xf32> to vector<1x8x8xbf16>
    "tpu.trace_start"() <{level = 10 : i32, message = "bqk,bkd->bqd"}> : () -> ()
    %cst_24 = arith.constant dense<0.000000e+00> : vector<1x8x16xf32>
    %45 = tpu.matmul %44, %30, %cst_24 {dimension_numbers = #tpu.dot_dimension_numbers<[2], [1], [1], [2], [0, 0, 0, 1, 1, 2], [0], [0]>} : vector<1x8x8xbf16>, vector<1x8x16xbf16>, vector<1x8x16xf32> -> vector<1x8x16xf32>
    "tpu.trace_stop"() : () -> ()
    %46 = vector.extract_strided_slice %13 {offsets = [0, 0, 16], sizes = [1, 8, 16], strides = [1, 1, 1]} : vector<1x8x32xbf16> to vector<1x8x16xbf16>
    %47 = vector.extract_strided_slice %20 {offsets = [0, 0, 16], sizes = [1, 8, 16], strides = [1, 1, 1]} : vector<1x8x32xbf16> to vector<1x8x16xbf16>
    %48 = vector.extract_strided_slice %27 {offsets = [0, 0, 16], sizes = [1, 8, 16], strides = [1, 1, 1]} : vector<1x8x32xbf16> to vector<1x8x16xbf16>
    "tpu.trace_start"() <{level = 10 : i32, message = "bqd,bkd->bqk"}> : () -> ()
    %cst_25 = arith.constant dense<0.000000e+00> : vector<1x8x8xf32>
    %49 = tpu.matmul %46, %47, %cst_25 {dimension_numbers = #tpu.dot_dimension_numbers<[2], [2], [1], [1], [0, 0, 0, 1, 1, 1], [0], [0]>} : vector<1x8x16xbf16>, vector<1x8x16xbf16>, vector<1x8x8xf32> -> vector<1x8x8xf32>
    "tpu.trace_stop"() : () -> ()
    %50 = vector.broadcast %6 : vector<1x1x8xf32> to vector<1x8x8xf32>
    %51 = arith.addf %49, %50 : vector<1x8x8xf32>
    %cst_26 = arith.constant dense<0xFF800000> : vector<1x8xf32>
    %52 = vector.multi_reduction <maximumf>, %51, %cst_26 [2] : vector<1x8x8xf32> to vector<1x8xf32>
    %53 = vector.shape_cast %52 : vector<1x8xf32> to vector<1x8x1xf32>
    %54 = vector.broadcast %53 : vector<1x8x1xf32> to vector<1x8x8xf32>
    %55 = arith.subf %51, %54 : vector<1x8x8xf32>
    %56 = math.exp %55 : vector<1x8x8xf32>
    %cst_27 = arith.constant dense<0.000000e+00> : vector<1x8xf32>
    %57 = vector.multi_reduction <add>, %56, %cst_27 [2] : vector<1x8x8xf32> to vector<1x8xf32>
    %58 = vector.shape_cast %57 : vector<1x8xf32> to vector<1x8x1xf32>
    %59 = tpu.reciprocal %58 {approx = true} : vector<1x8x1xf32> -> vector<1x8x1xf32>
    %60 = vector.broadcast %59 : vector<1x8x1xf32> to vector<1x8x8xf32>
    %61 = arith.mulf %56, %60 : vector<1x8x8xf32>
    %62 = arith.truncf %61 : vector<1x8x8xf32> to vector<1x8x8xbf16>
    "tpu.trace_start"() <{level = 10 : i32, message = "bqk,bkd->bqd"}> : () -> ()
    %cst_28 = arith.constant dense<0.000000e+00> : vector<1x8x16xf32>
    %63 = tpu.matmul %62, %48, %cst_28 {dimension_numbers = #tpu.dot_dimension_numbers<[2], [1], [1], [2], [0, 0, 0, 1, 1, 2], [0], [0]>} : vector<1x8x8xbf16>, vector<1x8x16xbf16>, vector<1x8x16xf32> -> vector<1x8x16xf32>
    "tpu.trace_stop"() : () -> ()
    %64 = tpu.concatenate %45, %63 in 2 : vector<1x8x16xf32>, vector<1x8x16xf32> -> vector<1x8x32xf32>
    %65 = vector.shape_cast %64 : vector<1x8x32xf32> to vector<8x32xf32>
    %66 = arith.truncf %65 : vector<8x32xf32> to vector<8x32xbf16>
    %c0_29 = arith.constant 0 : index
    %c0_30 = arith.constant 0 : index
    %67 = vector.load %arg21[%c0_29, %c0_30] : memref<8x32xbf16, #tpu.memory_space<vmem>>, vector<8x32xbf16>
    tpu.vector_store %arg21[%c0_29, %c0_30], %66 {strides = array<i32>} : memref<8x32xbf16, #tpu.memory_space<vmem>>, vector<8x32xbf16>,
    %c0_31 = arith.constant 0 : index
    %c0_32 = arith.constant 0 : index
    %68 = vector.load %arg21[%c0_31, %c0_32] : memref<8x32xbf16, #tpu.memory_space<vmem>>, vector<8x32xbf16>
    %c0_33 = arith.constant 0 : index
    %c0_34 = arith.constant 0 : index
    %69 = vector.load %arg10[%c0_33, %c0_34] : memref<32x32xbf16, #tpu.memory_space<vmem>>, vector<32x32xbf16>
    %cst_35 = arith.constant dense<0.000000e+00> : vector<8x32xf32>
    %70 = tpu.matmul %68, %69, %cst_35 {dimension_numbers = #tpu.dot_dimension_numbers<[1], [0], [0], [1], [0, 0, 1, 1], [], []>} : vector<8x32xbf16>, vector<32x32xbf16>, vector<8x32xf32> -> vector<8x32xf32>
    %c0_36 = arith.constant 0 : index
    %c0_37 = arith.constant 0 : index
    %71 = vector.load %arg11[%c0_36, %c0_37] : memref<1x32xf32, #tpu.memory_space<vmem>>, vector<1x32xf32>
    %72 = vector.broadcast %71 : vector<1x32xf32> to vector<8x32xf32>
    %73 = arith.addf %70, %72 : vector<8x32xf32>
    %74 = arith.extf %1 : vector<8x32xbf16> to vector<8x32xf32>
    %75 = arith.addf %74, %73 : vector<8x32xf32>
    %c0_38 = arith.constant 0 : index
    %c0_39 = arith.constant 0 : index
    %76 = vector.load %arg12[%c0_38, %c0_39] : memref<1x32xf32, #tpu.memory_space<vmem>>, vector<1x32xf32>
    %c0_40 = arith.constant 0 : index
    %c0_41 = arith.constant 0 : index
    %77 = vector.load %arg13[%c0_40, %c0_41] : memref<1x32xf32, #tpu.memory_space<vmem>>, vector<1x32xf32>
    %cst_42 = arith.constant dense<0.000000e+00> : vector<8xf32>
    %78 = vector.multi_reduction <add>, %75, %cst_42 [1] : vector<8x32xf32> to vector<8xf32>
    %79 = vector.shape_cast %78 : vector<8xf32> to vector<8x1xf32>
    %cst_43 = arith.constant 3.200000e+01 : f32
    %80 = vector.broadcast %cst_43 : f32 to vector<8x1xf32>
    %81 = arith.divf %79, %80 : vector<8x1xf32>
    %82 = vector.broadcast %81 : vector<8x1xf32> to vector<8x32xf32>
    %83 = arith.subf %75, %82 : vector<8x32xf32>
    %84 = arith.mulf %83, %83 : vector<8x32xf32>
    %cst_44 = arith.constant dense<0.000000e+00> : vector<8xf32>
    %85 = vector.multi_reduction <add>, %84, %cst_44 [1] : vector<8x32xf32> to vector<8xf32>
    %86 = vector.shape_cast %85 : vector<8xf32> to vector<8x1xf32>
    %cst_45 = arith.constant 3.200000e+01 : f32
    %87 = vector.broadcast %cst_45 : f32 to vector<8x1xf32>
    %88 = arith.divf %86, %87 : vector<8x1xf32>
    %89 = vector.broadcast %81 : vector<8x1xf32> to vector<8x32xf32>
    %90 = arith.subf %75, %89 : vector<8x32xf32>
    %cst_46 = arith.constant 9.99999974E-6 : f32
    %91 = vector.broadcast %cst_46 : f32 to vector<8x1xf32>
    %92 = arith.addf %88, %91 : vector<8x1xf32>
    %93 = math.rsqrt %92 : vector<8x1xf32>
    %94 = vector.broadcast %93 : vector<8x1xf32> to vector<8x32xf32>
    %95 = arith.mulf %90, %94 : vector<8x32xf32>
    %96 = vector.broadcast %76 : vector<1x32xf32> to vector<8x32xf32>
    %97 = arith.mulf %95, %96 : vector<8x32xf32>
    %98 = vector.broadcast %77 : vector<1x32xf32> to vector<8x32xf32>
    %99 = arith.addf %97, %98 : vector<8x32xf32>
    %100 = vector.shape_cast %99 : vector<8x32xf32> to vector<1x8x32xf32>
    %c0_47 = arith.constant 0 : index
    %c0_48 = arith.constant 0 : index
    %c0_49 = arith.constant 0 : index
    %101 = vector.load %arg22[%c0_47, %c0_48, %c0_49] : memref<1x8x32xf32, #tpu.memory_space<vmem>>, vector<1x8x32xf32>
    tpu.vector_store %arg22[%c0_47, %c0_48, %c0_49], %100 {strides = array<i32>} : memref<1x8x32xf32, #tpu.memory_space<vmem>>, vector<1x8x32xf32>,
    %c0_i32 = arith.constant 0 : i32
    %c1_i32 = arith.constant 1 : i32
    %102 = arith.muli %c0_i32, %c1_i32 : i32
    %c0_i32_50 = arith.constant 0 : i32
    %103 = arith.addi %c0_i32_50, %102 : i32
    %104 = arith.index_cast %103 : i32 to index
    %c0_51 = arith.constant 0 : index
    %c0_52 = arith.constant 0 : index
    %105 = vector.load %arg22[%104, %c0_51, %c0_52] : memref<1x8x32xf32, #tpu.memory_space<vmem>>, vector<1x8x32xf32>
    %106 = vector.shape_cast %105 : vector<1x8x32xf32> to vector<8x32xf32>
    %107 = arith.truncf %106 : vector<8x32xf32> to vector<8x32xbf16>
    %c0_53 = arith.constant 0 : index
    %c0_54 = arith.constant 0 : index
    %108 = vector.load %arg14[%c0_53, %c0_54] : memref<32x64xbf16, #tpu.memory_space<vmem>>, vector<32x64xbf16>
    %cst_55 = arith.constant dense<0.000000e+00> : vector<8x64xf32>
    %109 = tpu.matmul %107, %108, %cst_55 {dimension_numbers = #tpu.dot_dimension_numbers<[1], [0], [0], [1], [0, 0, 1, 1], [], []>} : vector<8x32xbf16>, vector<32x64xbf16>, vector<8x64xf32> -> vector<8x64xf32>
    %c0_56 = arith.constant 0 : index
    %c0_57 = arith.constant 0 : index
    %110 = vector.load %arg15[%c0_56, %c0_57] : memref<1x64xf32, #tpu.memory_space<vmem>>, vector<1x64xf32>
    %111 = vector.broadcast %110 : vector<1x64xf32> to vector<8x64xf32>
    %112 = arith.addf %109, %111 : vector<8x64xf32>
    %cst_58 = arith.constant 5.000000e-01 : f32
    %113 = vector.broadcast %cst_58 : f32 to vector<8x64xf32>
    %114 = arith.mulf %113, %112 : vector<8x64xf32>
    %cst_59 = arith.constant 0.707106769 : f32
    %115 = vector.broadcast %cst_59 : f32 to vector<8x64xf32>
    %116 = arith.mulf %112, %115 : vector<8x64xf32>
    %cst_60 = arith.constant 0.000000e+00 : f32
    %117 = vector.broadcast %cst_60 : f32 to vector<8x64xf32>
    %118 = arith.cmpf oge, %116, %117 : vector<8x64xf32>
    %cst_61 = arith.constant 1.000000e+00 : f32
    %cst_62 = arith.constant -1.000000e+00 : f32
    %119 = vector.broadcast %cst_61 : f32 to vector<8x64xf32>
    %120 = vector.broadcast %cst_62 : f32 to vector<8x64xf32>
    %121 = arith.select %118, %119, %120 : vector<8x64xi1>, vector<8x64xf32>
    %122 = math.absf %116 : vector<8x64xf32>
    %cst_63 = arith.constant 0.327591091 : f32
    %123 = vector.broadcast %cst_63 : f32 to vector<8x64xf32>
    %124 = arith.mulf %123, %122 : vector<8x64xf32>
    %cst_64 = arith.constant 1.000000e+00 : f32
    %125 = vector.broadcast %cst_64 : f32 to vector<8x64xf32>
    %126 = arith.addf %125, %124 : vector<8x64xf32>
    %127 = tpu.reciprocal %126 {approx = true} : vector<8x64xf32> -> vector<8x64xf32>
    %cst_65 = arith.constant 1.06140542 : f32
    %128 = vector.broadcast %cst_65 : f32 to vector<8x64xf32>
    %129 = arith.mulf %127, %128 : vector<8x64xf32>
    %cst_66 = arith.constant -1.45315206 : f32
    %130 = vector.broadcast %cst_66 : f32 to vector<8x64xf32>
    %131 = arith.addf %130, %129 : vector<8x64xf32>
    %132 = arith.mulf %127, %131 : vector<8x64xf32>
    %cst_67 = arith.constant 1.42141378 : f32
    %133 = vector.broadcast %cst_67 : f32 to vector<8x64xf32>
    %134 = arith.addf %133, %132 : vector<8x64xf32>
    %135 = arith.mulf %127, %134 : vector<8x64xf32>
    %cst_68 = arith.constant -0.284496725 : f32
    %136 = vector.broadcast %cst_68 : f32 to vector<8x64xf32>
    %137 = arith.addf %136, %135 : vector<8x64xf32>
    %138 = arith.mulf %127, %137 : vector<8x64xf32>
    %cst_69 = arith.constant 0.254829586 : f32
    %139 = vector.broadcast %cst_69 : f32 to vector<8x64xf32>
    %140 = arith.addf %139, %138 : vector<8x64xf32>
    %141 = arith.mulf %127, %140 : vector<8x64xf32>
    %cst_70 = arith.constant 0.000000e+00 : f32
    %142 = vector.broadcast %cst_70 : f32 to vector<8x64xf32>
    %143 = arith.subf %142, %122 : vector<8x64xf32>
    %144 = arith.mulf %143, %122 : vector<8x64xf32>
    %145 = math.exp %144 : vector<8x64xf32>
    %146 = arith.mulf %141, %145 : vector<8x64xf32>
    %cst_71 = arith.constant 1.000000e+00 : f32
    %147 = vector.broadcast %cst_71 : f32 to vector<8x64xf32>
    %148 = arith.subf %147, %146 : vector<8x64xf32>
    %149 = arith.mulf %121, %148 : vector<8x64xf32>
    %cst_72 = arith.constant 1.000000e+00 : f32
    %150 = vector.broadcast %cst_72 : f32 to vector<8x64xf32>
    %151 = arith.addf %150, %149 : vector<8x64xf32>
    %152 = arith.mulf %114, %151 : vector<8x64xf32>
    %153 = arith.truncf %152 : vector<8x64xf32> to vector<8x64xbf16>
    %c0_73 = arith.constant 0 : index
    %c0_74 = arith.constant 0 : index
    %154 = vector.load %arg16[%c0_73, %c0_74] : memref<64x32xbf16, #tpu.memory_space<vmem>>, vector<64x32xbf16>
    %cst_75 = arith.constant dense<0.000000e+00> : vector<8x32xf32>
    %155 = tpu.matmul %153, %154, %cst_75 {dimension_numbers = #tpu.dot_dimension_numbers<[1], [0], [0], [1], [0, 0, 1, 1], [], []>} : vector<8x64xbf16>, vector<64x32xbf16>, vector<8x32xf32> -> vector<8x32xf32>
    %c0_76 = arith.constant 0 : index
    %c0_77 = arith.constant 0 : index
    %156 = vector.load %arg17[%c0_76, %c0_77] : memref<1x32xf32, #tpu.memory_space<vmem>>, vector<1x32xf32>
    %157 = vector.broadcast %156 : vector<1x32xf32> to vector<8x32xf32>
    %158 = arith.addf %155, %157 : vector<8x32xf32>
    %159 = arith.addf %106, %158 : vector<8x32xf32>
    %c0_78 = arith.constant 0 : index
    %c0_79 = arith.constant 0 : index
    %160 = vector.load %arg18[%c0_78, %c0_79] : memref<1x32xf32, #tpu.memory_space<vmem>>, vector<1x32xf32>
    %c0_80 = arith.constant 0 : index
    %c0_81 = arith.constant 0 : index
    %161 = vector.load %arg19[%c0_80, %c0_81] : memref<1x32xf32, #tpu.memory_space<vmem>>, vector<1x32xf32>
    %cst_82 = arith.constant dense<0.000000e+00> : vector<8xf32>
    %162 = vector.multi_reduction <add>, %159, %cst_82 [1] : vector<8x32xf32> to vector<8xf32>
    %163 = vector.shape_cast %162 : vector<8xf32> to vector<8x1xf32>
    %cst_83 = arith.constant 3.200000e+01 : f32
    %164 = vector.broadcast %cst_83 : f32 to vector<8x1xf32>
    %165 = arith.divf %163, %164 : vector<8x1xf32>
    %166 = vector.broadcast %165 : vector<8x1xf32> to vector<8x32xf32>
    %167 = arith.subf %159, %166 : vector<8x32xf32>
    %168 = arith.mulf %167, %167 : vector<8x32xf32>
    %cst_84 = arith.constant dense<0.000000e+00> : vector<8xf32>
    %169 = vector.multi_reduction <add>, %168, %cst_84 [1] : vector<8x32xf32> to vector<8xf32>
    %170 = vector.shape_cast %169 : vector<8xf32> to vector<8x1xf32>
    %cst_85 = arith.constant 3.200000e+01 : f32
    %171 = vector.broadcast %cst_85 : f32 to vector<8x1xf32>
    %172 = arith.divf %170, %171 : vector<8x1xf32>
    %173 = vector.broadcast %165 : vector<8x1xf32> to vector<8x32xf32>
    %174 = arith.subf %159, %173 : vector<8x32xf32>
    %cst_86 = arith.constant 9.99999974E-6 : f32
    %175 = vector.broadcast %cst_86 : f32 to vector<8x1xf32>
    %176 = arith.addf %172, %175 : vector<8x1xf32>
    %177 = math.rsqrt %176 : vector<8x1xf32>
    %178 = vector.broadcast %177 : vector<8x1xf32> to vector<8x32xf32>
    %179 = arith.mulf %174, %178 : vector<8x32xf32>
    %180 = vector.broadcast %160 : vector<1x32xf32> to vector<8x32xf32>
    %181 = arith.mulf %179, %180 : vector<8x32xf32>
    %182 = vector.broadcast %161 : vector<1x32xf32> to vector<8x32xf32>
    %183 = arith.addf %181, %182 : vector<8x32xf32>
    %184 = arith.index_cast %103 : i32 to index
    %c0_87 = arith.constant 0 : index
    %c0_88 = arith.constant 0 : index
    %185 = vector.load %arg3[%184, %c0_87, %c0_88] : memref<1x8x1xf32, #tpu.memory_space<vmem>>, vector<1x8x1xf32>
    %186 = vector.shape_cast %185 : vector<1x8x1xf32> to vector<8x1xf32>
    %187 = vector.broadcast %186 : vector<8x1xf32> to vector<8x32xf32>
    %188 = arith.mulf %183, %187 : vector<8x32xf32>
    %cst_89 = arith.constant dense<0.000000e+00> : vector<32xf32>
    %189 = vector.multi_reduction <add>, %188, %cst_89 [0] : vector<8x32xf32> to vector<32xf32>
    %190 = vector.shape_cast %189 : vector<32xf32> to vector<1x32xf32>
    %cst_90 = arith.constant dense<0.000000e+00> : vector<1xf32>
    %191 = vector.multi_reduction <add>, %186, %cst_90 [0] : vector<8x1xf32> to vector<1xf32>
    %192 = vector.shape_cast %191 : vector<1xf32> to vector<1x1xf32>
    %cst_91 = arith.constant 9.99999971E-10 : f32
    %193 = vector.broadcast %cst_91 : f32 to vector<1x1xf32>
    %194 = arith.maximumf %192, %193 : vector<1x1xf32>
    %195 = tpu.reciprocal %194 {approx = true} : vector<1x1xf32> -> vector<1x1xf32>
    %196 = vector.broadcast %195 : vector<1x1xf32> to vector<1x32xf32>
    %197 = arith.mulf %190, %196 : vector<1x32xf32>
    %198 = arith.index_cast %103 : i32 to index
    %c0_92 = arith.constant 0 : index
    %c0_93 = arith.constant 0 : index
    %199 = vector.load %arg20[%198, %c0_92, %c0_93] : memref<1x1x32xf32, #tpu.memory_space<vmem>>, vector<1x1x32xf32>
    %200 = vector.shape_cast %199 : vector<1x1x32xf32> to vector<1x32xf32>
    %201 = vector.shape_cast %197 : vector<1x32xf32> to vector<1x1x32xf32>
    tpu.vector_store %arg20[%198, %c0_92, %c0_93], %201 {strides = array<i32>} : memref<1x1x32xf32, #tpu.memory_space<vmem>>, vector<1x1x32xf32>,
    %c1_i32_94 = arith.constant 1 : i32
    return
  }
  func.func @transform_0(%arg0: i32) -> (i32, i32, i32) {
    %c0_i32 = arith.constant 0 : i32
    %c0_i32_0 = arith.constant 0 : i32
    %c0_i32_1 = arith.constant 0 : i32
    return %arg0, %c0_i32, %c0_i32_0 : i32, i32, i32
  }
  func.func @transform_1(%arg0: i32) -> (i32, i32, i32) {
    %c0_i32 = arith.constant 0 : i32
    %c0_i32_0 = arith.constant 0 : i32
    %c0_i32_1 = arith.constant 0 : i32
    return %arg0, %c0_i32, %c0_i32_0 : i32, i32, i32
  }
  func.func @transform_2(%arg0: i32) -> (i32, i32, i32) {
    %c0_i32 = arith.constant 0 : i32
    %c0_i32_0 = arith.constant 0 : i32
    %c0_i32_1 = arith.constant 0 : i32
    return %arg0, %c0_i32, %c0_i32_0 : i32, i32, i32
  }
  func.func @transform_3(%arg0: i32) -> (i32, i32) {
    %c0_i32 = arith.constant 0 : i32
    %c0_i32_0 = arith.constant 0 : i32
    %c0_i32_1 = arith.constant 0 : i32
    return %c0_i32, %c0_i32_0 : i32, i32
  }
  func.func @transform_4(%arg0: i32) -> (i32, i32) {
    %c0_i32 = arith.constant 0 : i32
    %c0_i32_0 = arith.constant 0 : i32
    %c0_i32_1 = arith.constant 0 : i32
    return %c0_i32, %c0_i32_0 : i32, i32
  }
  func.func @transform_5(%arg0: i32) -> (i32, i32) {
    %c0_i32 = arith.constant 0 : i32
    %c0_i32_0 = arith.constant 0 : i32
    %c0_i32_1 = arith.constant 0 : i32
    return %c0_i32, %c0_i32_0 : i32, i32
  }
  func.func @transform_6(%arg0: i32) -> (i32, i32) {
    %c0_i32 = arith.constant 0 : i32
    %c0_i32_0 = arith.constant 0 : i32
    %c0_i32_1 = arith.constant 0 : i32
    return %c0_i32, %c0_i32_0 : i32, i32
  }
  func.func @transform_7(%arg0: i32) -> (i32, i32) {
    %c0_i32 = arith.constant 0 : i32
    %c0_i32_0 = arith.constant 0 : i32
    %c0_i32_1 = arith.constant 0 : i32
    return %c0_i32, %c0_i32_0 : i32, i32
  }
  func.func @transform_8(%arg0: i32) -> (i32, i32) {
    %c0_i32 = arith.constant 0 : i32
    %c0_i32_0 = arith.constant 0 : i32
    %c0_i32_1 = arith.constant 0 : i32
    return %c0_i32, %c0_i32_0 : i32, i32
  }
  func.func @transform_9(%arg0: i32) -> (i32, i32) {
    %c0_i32 = arith.constant 0 : i32
    %c0_i32_0 = arith.constant 0 : i32
    %c0_i32_1 = arith.constant 0 : i32
    return %c0_i32, %c0_i32_0 : i32, i32
  }
  func.func @transform_10(%arg0: i32) -> (i32, i32) {
    %c0_i32 = arith.constant 0 : i32
    %c0_i32_0 = arith.constant 0 : i32
    %c0_i32_1 = arith.constant 0 : i32
    return %c0_i32, %c0_i32_0 : i32, i32
  }
  func.func @transform_11(%arg0: i32) -> (i32, i32) {
    %c0_i32 = arith.constant 0 : i32
    %c0_i32_0 = arith.constant 0 : i32
    %c0_i32_1 = arith.constant 0 : i32
    return %c0_i32, %c0_i32_0 : i32, i32
  }
  func.func @transform_12(%arg0: i32) -> (i32, i32) {
    %c0_i32 = arith.constant 0 : i32
    %c0_i32_0 = arith.constant 0 : i32
    %c0_i32_1 = arith.constant 0 : i32
    return %c0_i32, %c0_i32_0 : i32, i32
  }
  func.func @transform_13(%arg0: i32) -> (i32, i32) {
    %c0_i32 = arith.constant 0 : i32
    %c0_i32_0 = arith.constant 0 : i32
    %c0_i32_1 = arith.constant 0 : i32
    return %c0_i32, %c0_i32_0 : i32, i32
  }
  func.func @transform_14(%arg0: i32) -> (i32, i32) {
    %c0_i32 = arith.constant 0 : i32
    %c0_i32_0 = arith.constant 0 : i32
    %c0_i32_1 = arith.constant 0 : i32
    return %c0_i32, %c0_i32_0 : i32, i32
  }
  func.func @transform_15(%arg0: i32) -> (i32, i32) {
    %c0_i32 = arith.constant 0 : i32
    %c0_i32_0 = arith.constant 0 : i32
    %c0_i32_1 = arith.constant 0 : i32
    return %c0_i32, %c0_i32_0 : i32, i32
  }
  func.func @transform_16(%arg0: i32) -> (i32, i32) {
    %c0_i32 = arith.constant 0 : i32
    %c0_i32_0 = arith.constant 0 : i32
    %c0_i32_1 = arith.constant 0 : i32
    return %c0_i32, %c0_i32_0 : i32, i32
  }
  func.func @transform_17(%arg0: i32) -> (i32, i32) {
    %c0_i32 = arith.constant 0 : i32
    %c0_i32_0 = arith.constant 0 : i32
    %c0_i32_1 = arith.constant 0 : i32
    return %c0_i32, %c0_i32_0 : i32, i32
  }
  func.func @transform_18(%arg0: i32) -> (i32, i32) {
    %c0_i32 = arith.constant 0 : i32
    %c0_i32_0 = arith.constant 0 : i32
    %c0_i32_1 = arith.constant 0 : i32
    return %c0_i32, %c0_i32_0 : i32, i32
  }
  func.func @transform_19(%arg0: i32) -> (i32, i32, i32) {
    %c0_i32 = arith.constant 0 : i32
    %c0_i32_0 = arith.constant 0 : i32
    %c0_i32_1 = arith.constant 0 : i32
    return %arg0, %c0_i32, %c0_i32_0 : i32, i32, i32
  }
}

</mosaic_0001>

<llo_original>
// kernel: tpu_custom_call.1
$region0: #{tpu_custom_call.1}
  #allocation0 [shape = 'u32[]', space=smem, size = 0x4, offset = 0x4, fixed_abs, tag = 'smem constant byte address 0x4 - core index']
  #allocation1 [shape = 'u32[144,128]{1,0:T(1,128)}', space=vmem, size = 0x12000, scoped, tag = 'internal scratch']
  #allocation2 [shape = 'bf16[8,32]{1,0:T(8,128)(2,1)}', space=vmem, size = 0x800, scoped, tag = 'scratch operand']
  #allocation3 [shape = 'f32[1,8,32]{2,1,0:T(8,128)}', space=vmem, size = 0x1000, scoped, tag = 'scratch operand']
  %s0 = inlined_call_operand.hbm [shape: bf16[2,8,32], index: 0, kind: input, shape index: {}]
  %s1 = inlined_call_operand.hbm [shape: f32[2,1,8], index: 1, kind: input, shape index: {}]
  %s2 = inlined_call_operand.hbm [shape: f32[2,8,1], index: 2, kind: input, shape index: {}]
  %s3 = inlined_call_operand.hbm [shape: bf16[32,32], index: 3, kind: input, shape index: {}]
  %s4 = inlined_call_operand.hbm [shape: f32[1,32], index: 4, kind: input, shape index: {}]
  %s5 = inlined_call_operand.hbm [shape: bf16[32,32], index: 5, kind: input, shape index: {}]
  %s6 = inlined_call_operand.hbm [shape: f32[1,32], index: 6, kind: input, shape index: {}]
  %s7 = inlined_call_operand.hbm [shape: bf16[32,32], index: 7, kind: input, shape index: {}]
  %s8 = inlined_call_operand.hbm [shape: f32[1,32], index: 8, kind: input, shape index: {}]
  %s9 = inlined_call_operand.hbm [shape: bf16[32,32], index: 9, kind: input, shape index: {}]
  %s10 = inlined_call_operand.hbm [shape: f32[1,32], index: 10, kind: input, shape index: {}]
  %s11 = inlined_call_operand.hbm [shape: f32[1,32], index: 11, kind: input, shape index: {}]
  %s12 = inlined_call_operand.hbm [shape: f32[1,32], index: 12, kind: input, shape index: {}]
  %s13 = inlined_call_operand.hbm [shape: bf16[32,64], index: 13, kind: input, shape index: {}]
  %s14 = inlined_call_operand.hbm [shape: f32[1,64], index: 14, kind: input, shape index: {}]
  %s15 = inlined_call_operand.hbm [shape: bf16[64,32], index: 15, kind: input, shape index: {}]
  %s16 = inlined_call_operand.hbm [shape: f32[1,32], index: 16, kind: input, shape index: {}]
  %s17 = inlined_call_operand.hbm [shape: f32[1,32], index: 17, kind: input, shape index: {}]
  %s18 = inlined_call_operand.hbm [shape: f32[1,32], index: 18, kind: input, shape index: {}]
  %s19 = inlined_call_operand.hbm [shape: f32[2,1,32], index: 19, kind: output, shape index: {}]
  %s20 = sld [smem:[#allocation0]]
  $region185: #{tpu_custom_call.1} parent=0
    _
  %s22 = ssub.s32 1, %s20
  %s23 = scalar_select 0, %s22, %s20
  $region1: #{tpu_custom_call.1} parent=0
    #allocation4 [shape = 'u8[4096]{0}', space=vmem, size = 0x1000, scoped, tag = 'input window, operand 0']
    #allocation5 [shape = 's32[2]{0}', space=sflag, size = 0x8, scoped, tag = 'scoped memory for tpu_custom_call.1']
    #allocation6 [shape = 's32[2]{0}', space=sflag, size = 0x8, scoped, tag = 'scoped memory for tpu_custom_call.1']
    #allocation7 [shape = 'u8[1024]{0}', space=vmem, size = 0x400, scoped, tag = 'input window, operand 1']
    #allocation8 [shape = 's32[2]{0}', space=sflag, size = 0x8, scoped, tag = 'scoped memory for tpu_custom_call.1']
    #allocation9 [shape = 'u8[8192]{0}', space=vmem, size = 0x2000, scoped, tag = 'input window, operand 2']
    #allocation10 [shape = 'u8[8192]{0}', space=vmem, size = 0x2000, scoped, tag = 'input window, operand 3, single buffered']
    #allocation11 [shape = 's32[1]{0}', space=sflag, size = 0x4, scoped, tag = 'scoped memory for tpu_custom_call.1']
    #allocation12 [shape = 'u8[512]{0}', space=vmem, size = 0x400, scoped, tag = 'input window, operand 4, single buffered']
    #allocation13 [shape = 'u8[8192]{0}', space=vmem, size = 0x2000, scoped, tag = 'input window, operand 5, single buffered']
    #allocation14 [shape = 's32[1]{0}', space=sflag, size = 0x4, scoped, tag = 'scoped memory for tpu_custom_call.1']
    #allocation15 [shape = 'u8[512]{0}', space=vmem, size = 0x400, scoped, tag = 'input window, operand 6, single buffered']
    #allocation16 [shape = 'u8[8192]{0}', space=vmem, size = 0x2000, scoped, tag = 'input window, operand 7, single buffered']
    #allocation17 [shape = 's32[1]{0}', space=sflag, size = 0x4, scoped, tag = 'scoped memory for tpu_custom_call.1']
    #allocation18 [shape = 'u8[512]{0}', space=vmem, size = 0x400, scoped, tag = 'input window, operand 8, single buffered']
    #allocation19 [shape = 'u8[8192]{0}', space=vmem, size = 0x2000, scoped, tag = 'input window, operand 9, single buffered']
    #allocation20 [shape = 's32[1]{0}', space=sflag, size = 0x4, scoped, tag = 'scoped memory for tpu_custom_call.1']
    #allocation21 [shape = 'u8[512]{0}', space=vmem, size = 0x400, scoped, tag = 'input window, operand 10, single buffered']
    #allocation22 [shape = 'u8[512]{0}', space=vmem, size = 0x400, scoped, tag = 'input window, operand 11, single buffered']
    #allocation23 [shape = 's32[1]{0}', space=sflag, size = 0x4, scoped, tag = 'scoped memory for tpu_custom_call.1']
    #allocation24 [shape = 'u8[512]{0}', space=vmem, size = 0x400, scoped, tag = 'input window, operand 12, single buffered']
    #allocation25 [shape = 'u8[8192]{0}', space=vmem, size = 0x2000, scoped, tag = 'input window, operand 13, single buffered']
    #allocation26 [shape = 's32[1]{0}', space=sflag, size = 0x4, scoped, tag = 'scoped memory for tpu_custom_call.1']
    #allocation27 [shape = 'u8[512]{0}', space=vmem, size = 0x400, scoped, tag = 'input window, operand 14, single buffered']
    #allocation28 [shape = 'u8[16384]{0}', space=vmem, size = 0x4000, scoped, tag = 'input window, operand 15, single buffered']
    #allocation29 [shape = 's32[1]{0}', space=sflag, size = 0x4, scoped, tag = 'scoped memory for tpu_custom_call.1']
    #allocation30 [shape = 'u8[512]{0}', space=vmem, size = 0x400, scoped, tag = 'input window, operand 16, single buffered']
    #allocation31 [shape = 'u8[512]{0}', space=vmem, size = 0x400, scoped, tag = 'input window, operand 17, single buffered']
    #allocation32 [shape = 's32[1]{0}', space=sflag, size = 0x4, scoped, tag = 'scoped memory for tpu_custom_call.1']
    #allocation33 [shape = 'u8[512]{0}', space=vmem, size = 0x400, scoped, tag = 'input window, operand 18, single buffered']
    #allocation34 [shape = 'u8[1024]{0}', space=vmem, size = 0x400, scoped, tag = 'output window, operand 0']
    %24 = vsyncpa [#allocation5], 0
    %s25 = scalar_lea.sflag [#allocation5], 1
    %26 = vsyncpa %s25, 0
    %27 = vsyncpa [#allocation8], 0
    %s28 = scalar_lea.sflag [#allocation8], 1
    %29 = vsyncpa %s28, 0
    %30 = vsyncpa [#allocation11], 0
    %31 = vsyncpa [#allocation14], 0
    %32 = vsyncpa [#allocation17], 0
    %33 = vsyncpa [#allocation20], 0
    %34 = vsyncpa [#allocation23], 0
    %35 = vsyncpa [#allocation26], 0
    %36 = vsyncpa [#allocation29], 0
    %37 = vsyncpa [#allocation32], 0
    %38 = vsyncpa [#allocation6], 0
    %s39 = scalar_lea.sflag [#allocation6], 1
    %40 = vsyncpa %s39, 0
    loop: start=0, step=1, limit=4
    $region2: #{tpu_custom_call.1} parent=1 // loop_pre_header
      _
    $region3: #{tpu_custom_call.1} parent=1 // loop_header
      %s42 = sphi 0, %s46
      %p43 = scmp.ge.s32.totalorder %s42, 4
      %s52 = sphi 0, %s54
      %s55 = sphi 0, %s52
      %s56 = sphi 0, %s55
      %s72 = sphi 0, %s56
      %s78 = sphi 0, %s80
      %s81 = sphi 0, %s78
      %s82 = sphi 0, %s81
      %s98 = sphi 0, %s82
      %s104 = sphi 0, %s106
      %s107 = sphi 0, %s104
      %s108 = sphi 0, %s107
      %s124 = sphi 0, %s108
      %s128 = sphi 0, %s128
      %s130 = sphi 0, %s128
      %s131 = sphi 0, %s130
      %s145 = sphi 0, %s131
      %s149 = sphi 0, %s149
      %s151 = sphi 0, %s149
      %s152 = sphi 0, %s151
      %s166 = sphi 0, %s152
      %s170 = sphi 0, %s170
      %s172 = sphi 0, %s170
      %s173 = sphi 0, %s172
      %s187 = sphi 0, %s173
      %s191 = sphi 0, %s191
      %s193 = sphi 0, %s191
      %s194 = sphi 0, %s193
      %s208 = sphi 0, %s194
      %s212 = sphi 0, %s212
      %s214 = sphi 0, %s212
      %s215 = sphi 0, %s214
      %s229 = sphi 0, %s215
      %s233 = sphi 0, %s233
      %s235 = sphi 0, %s233
      %s236 = sphi 0, %s235
      %s250 = sphi 0, %s236
      %s254 = sphi 0, %s254
      %s256 = sphi 0, %s254
      %s257 = sphi 0, %s256
      %s271 = sphi 0, %s257
      %s275 = sphi 0, %s275
      %s277 = sphi 0, %s275
      %s278 = sphi 0, %s277
      %s292 = sphi 0, %s278
      %s296 = sphi 0, %s296
      %s298 = sphi 0, %s296
      %s299 = sphi 0, %s298
      %s313 = sphi 0, %s299
      %s317 = sphi 0, %s317
      %s319 = sphi 0, %s317
      %s320 = sphi 0, %s319
      %s334 = sphi 0, %s320
      %s338 = sphi 0, %s338
      %s340 = sphi 0, %s338
      %s341 = sphi 0, %s340
      %s355 = sphi 0, %s341
      %s359 = sphi 0, %s359
      %s361 = sphi 0, %s359
      %s362 = sphi 0, %s361
      %s376 = sphi 0, %s362
      %s380 = sphi 0, %s380
      %s382 = sphi 0, %s380
      %s383 = sphi 0, %s382
      %s397 = sphi 0, %s383
      %s401 = sphi 0, %s401
      %s403 = sphi 0, %s401
      %s404 = sphi 0, %s403
      %s418 = sphi 0, %s404
      %s422 = sphi 0, %s422
      %s424 = sphi 0, %s422
      %s425 = sphi 0, %s424
      %s439 = sphi 0, %s425
      %s443 = sphi 0, %s443
      %s445 = sphi 0, %s443
      %s446 = sphi 0, %s445
      %s460 = sphi 0, %s446
      %s466 = sphi 0, %s468
      %s469 = sphi 0, %s466
      %s470 = sphi 0, %s469
      %s486 = sphi 0, %s470
    $region4: #{tpu_custom_call.1} parent=1 // loop_header_branch
      %45 = sbr.rel (%p43) target = $region8
    $region5: #{tpu_custom_call.1} parent=1 // loop_body
      %s47 = ssub.s32 %s42, 1
      %s48 = ssub.s32 %s42, 2
      %s49 = sadd.s32 %s42, 1
      %s50 = ssub.s32 %s42, %s49
      %p51 = scmp.eq.s32.totalorder %s50, 0
      %s53 = sadd.s32 %s52, 1
      %s54 = scalar_select %p51, %s52, %s53
      %p57 = pneg %p51
      %p58 = scmp.eq.s32.totalorder %s42, 1
      %p59 = por %p57, %p58
      %p60 = scmp.ne.s32.totalorder %s52, %s55
      %p61 = scmp.eq.s32.totalorder %s42, 0
      %p62 = por %p60, %p61
      %p63 = scmp.ne.s32.totalorder %s52, %s55
      %p64 = scmp.eq.s32.totalorder %s47, 1
      %p65 = por %p63, %p64
      %p66 = scmp.ne.s32.totalorder %s55, %s56
      %p67 = scmp.eq.s32.totalorder %s47, 0
      %p68 = por %p66, %p67
      %p69 = scmp.ne.s32.totalorder %s55, %s56
      %p70 = scmp.eq.s32.totalorder %s48, 1
      %p71 = por %p69, %p70
      %p73 = scmp.ne.s32.totalorder %s56, %s72
      %p74 = scmp.eq.s32.totalorder %s48, 0
      %p75 = por %p73, %p74
      %s76 = ssub.s32 %s42, %s49
      %p77 = scmp.eq.s32.totalorder %s76, 0
      %s79 = sadd.s32 %s78, 1
      %s80 = scalar_select %p77, %s78, %s79
      %p83 = pneg %p77
      %p84 = scmp.eq.s32.totalorder %s42, 1
      %p85 = por %p83, %p84
      %p86 = scmp.ne.s32.totalorder %s78, %s81
      %p87 = scmp.eq.s32.totalorder %s42, 0
      %p88 = por %p86, %p87
      %p89 = scmp.ne.s32.totalorder %s78, %s81
      %p90 = scmp.eq.s32.totalorder %s47, 1
      %p91 = por %p89, %p90
      %p92 = scmp.ne.s32.totalorder %s81, %s82
      %p93 = scmp.eq.s32.totalorder %s47, 0
      %p94 = por %p92, %p93
      %p95 = scmp.ne.s32.totalorder %s81, %s82
      %p96 = scmp.eq.s32.totalorder %s48, 1
      %p97 = por %p95, %p96
      %p99 = scmp.ne.s32.totalorder %s82, %s98
      %p100 = scmp.eq.s32.totalorder %s48, 0
      %p101 = por %p99, %p100
      %s102 = ssub.s32 %s42, %s49
      %p103 = scmp.eq.s32.totalorder %s102, 0
      %s105 = sadd.s32 %s104, 1
      %s106 = scalar_select %p103, %s104, %s105
      %p109 = pneg %p103
      %p110 = scmp.eq.s32.totalorder %s42, 1
      %p111 = por %p109, %p110
      %p112 = scmp.ne.s32.totalorder %s104, %s107
      %p113 = scmp.eq.s32.totalorder %s42, 0
      %p114 = por %p112, %p113
      %p115 = scmp.ne.s32.totalorder %s104, %s107
      %p116 = scmp.eq.s32.totalorder %s47, 1
      %p117 = por %p115, %p116
      %p118 = scmp.ne.s32.totalorder %s107, %s108
      %p119 = scmp.eq.s32.totalorder %s47, 0
      %p120 = por %p118, %p119
      %p121 = scmp.ne.s32.totalorder %s107, %s108
      %p122 = scmp.eq.s32.totalorder %s48, 1
      %p123 = por %p121, %p122
      %p125 = scmp.ne.s32.totalorder %s108, %s124
      %p126 = scmp.eq.s32.totalorder %s48, 0
      %p127 = por %p125, %p126
      %s129 = sadd.s32 %s128, 1
      %p132 = scmp.eq.s32.totalorder %s42, 1
      %p133 = scmp.ne.s32.totalorder %s128, %s130
      %p134 = scmp.eq.s32.totalorder %s42, 0
      %p135 = por %p133, %p134
      %p136 = scmp.ne.s32.totalorder %s128, %s130
      %p137 = scmp.eq.s32.totalorder %s47, 1
      %p138 = por %p136, %p137
      %p139 = scmp.ne.s32.totalorder %s130, %s131
      %p140 = scmp.eq.s32.totalorder %s47, 0
      %p141 = por %p139, %p140
      %p142 = scmp.ne.s32.totalorder %s130, %s131
      %p143 = scmp.eq.s32.totalorder %s48, 1
      %p144 = por %p142, %p143
      %p146 = scmp.ne.s32.totalorder %s131, %s145
      %p147 = scmp.eq.s32.totalorder %s48, 0
      %p148 = por %p146, %p147
      %s150 = sadd.s32 %s149, 1
      %p153 = scmp.eq.s32.totalorder %s42, 1
      %p154 = scmp.ne.s32.totalorder %s149, %s151
      %p155 = scmp.eq.s32.totalorder %s42, 0
      %p156 = por %p154, %p155
      %p157 = scmp.ne.s32.totalorder %s149, %s151
      %p158 = scmp.eq.s32.totalorder %s47, 1
      %p159 = por %p157, %p158
      %p160 = scmp.ne.s32.totalorder %s151, %s152
      %p161 = scmp.eq.s32.totalorder %s47, 0
      %p162 = por %p160, %p161
      %p163 = scmp.ne.s32.totalorder %s151, %s152
      %p164 = scmp.eq.s32.totalorder %s48, 1
      %p165 = por %p163, %p164
      %p167 = scmp.ne.s32.totalorder %s152, %s166
      %p168 = scmp.eq.s32.totalorder %s48, 0
      %p169 = por %p167, %p168
      %s171 = sadd.s32 %s170, 1
      %p174 = scmp.eq.s32.totalorder %s42, 1
      %p175 = scmp.ne.s32.totalorder %s170, %s172
      %p176 = scmp.eq.s32.totalorder %s42, 0
      %p177 = por %p175, %p176
      %p178 = scmp.ne.s32.totalorder %s170, %s172
      %p179 = scmp.eq.s32.totalorder %s47, 1
      %p180 = por %p178, %p179
      %p181 = scmp.ne.s32.totalorder %s172, %s173
      %p182 = scmp.eq.s32.totalorder %s47, 0
      %p183 = por %p181, %p182
      %p184 = scmp.ne.s32.totalorder %s172, %s173
      %p185 = scmp.eq.s32.totalorder %s48, 1
      %p186 = por %p184, %p185
      %p188 = scmp.ne.s32.totalorder %s173, %s187
      %p189 = scmp.eq.s32.totalorder %s48, 0
      %p190 = por %p188, %p189
      %s192 = sadd.s32 %s191, 1
      %p195 = scmp.eq.s32.totalorder %s42, 1
      %p196 = scmp.ne.s32.totalorder %s191, %s193
      %p197 = scmp.eq.s32.totalorder %s42, 0
      %p198 = por %p196, %p197
      %p199 = scmp.ne.s32.totalorder %s191, %s193
      %p200 = scmp.eq.s32.totalorder %s47, 1
      %p201 = por %p199, %p200
      %p202 = scmp.ne.s32.totalorder %s193, %s194
      %p203 = scmp.eq.s32.totalorder %s47, 0
      %p204 = por %p202, %p203
      %p205 = scmp.ne.s32.totalorder %s193, %s194
      %p206 = scmp.eq.s32.totalorder %s48, 1
      %p207 = por %p205, %p206
      %p209 = scmp.ne.s32.totalorder %s194, %s208
      %p210 = scmp.eq.s32.totalorder %s48, 0
      %p211 = por %p209, %p210
      %s213 = sadd.s32 %s212, 1
      %p216 = scmp.eq.s32.totalorder %s42, 1
      %p217 = scmp.ne.s32.totalorder %s212, %s214
      %p218 = scmp.eq.s32.totalorder %s42, 0
      %p219 = por %p217, %p218
      %p220 = scmp.ne.s32.totalorder %s212, %s214
      %p221 = scmp.eq.s32.totalorder %s47, 1
      %p222 = por %p220, %p221
      %p223 = scmp.ne.s32.totalorder %s214, %s215
      %p224 = scmp.eq.s32.totalorder %s47, 0
      %p225 = por %p223, %p224
      %p226 = scmp.ne.s32.totalorder %s214, %s215
      %p227 = scmp.eq.s32.totalorder %s48, 1
      %p228 = por %p226, %p227
      %p230 = scmp.ne.s32.totalorder %s215, %s229
      %p231 = scmp.eq.s32.totalorder %s48, 0
      %p232 = por %p230, %p231
      %s234 = sadd.s32 %s233, 1
      %p237 = scmp.eq.s32.totalorder %s42, 1
      %p238 = scmp.ne.s32.totalorder %s233, %s235
      %p239 = scmp.eq.s32.totalorder %s42, 0
      %p240 = por %p238, %p239
      %p241 = scmp.ne.s32.totalorder %s233, %s235
      %p242 = scmp.eq.s32.totalorder %s47, 1
      %p243 = por %p241, %p242
      %p244 = scmp.ne.s32.totalorder %s235, %s236
      %p245 = scmp.eq.s32.totalorder %s47, 0
      %p246 = por %p244, %p245
      %p247 = scmp.ne.s32.totalorder %s235, %s236
      %p248 = scmp.eq.s32.totalorder %s48, 1
      %p249 = por %p247, %p248
      %p251 = scmp.ne.s32.totalorder %s236, %s250
      %p252 = scmp.eq.s32.totalorder %s48, 0
      %p253 = por %p251, %p252
      %s255 = sadd.s32 %s254, 1
      %p258 = scmp.eq.s32.totalorder %s42, 1
      %p259 = scmp.ne.s32.totalorder %s254, %s256
      %p260 = scmp.eq.s32.totalorder %s42, 0
      %p261 = por %p259, %p260
      %p262 = scmp.ne.s32.totalorder %s254, %s256
      %p263 = scmp.eq.s32.totalorder %s47, 1
      %p264 = por %p262, %p263
      %p265 = scmp.ne.s32.totalorder %s256, %s257
      %p266 = scmp.eq.s32.totalorder %s47, 0
      %p267 = por %p265, %p266
      %p268 = scmp.ne.s32.totalorder %s256, %s257
      %p269 = scmp.eq.s32.totalorder %s48, 1
      %p270 = por %p268, %p269
      %p272 = scmp.ne.s32.totalorder %s257, %s271
      %p273 = scmp.eq.s32.totalorder %s48, 0
      %p274 = por %p272, %p273
      %s276 = sadd.s32 %s275, 1
      %p279 = scmp.eq.s32.totalorder %s42, 1
      %p280 = scmp.ne.s32.totalorder %s275, %s277
      %p281 = scmp.eq.s32.totalorder %s42, 0
      %p282 = por %p280, %p281
      %p283 = scmp.ne.s32.totalorder %s275, %s277
      %p284 = scmp.eq.s32.totalorder %s47, 1
      %p285 = por %p283, %p284
      %p286 = scmp.ne.s32.totalorder %s277, %s278
      %p287 = scmp.eq.s32.totalorder %s47, 0
      %p288 = por %p286, %p287
      %p289 = scmp.ne.s32.totalorder %s277, %s278
      %p290 = scmp.eq.s32.totalorder %s48, 1
      %p291 = por %p289, %p290
      %p293 = scmp.ne.s32.totalorder %s278, %s292
      %p294 = scmp.eq.s32.totalorder %s48, 0
      %p295 = por %p293, %p294
      %s297 = sadd.s32 %s296, 1
      %p300 = scmp.eq.s32.totalorder %s42, 1
      %p301 = scmp.ne.s32.totalorder %s296, %s298
      %p302 = scmp.eq.s32.totalorder %s42, 0
      %p303 = por %p301, %p302
      %p304 = scmp.ne.s32.totalorder %s296, %s298
      %p305 = scmp.eq.s32.totalorder %s47, 1
      %p306 = por %p304, %p305
      %p307 = scmp.ne.s32.totalorder %s298, %s299
      %p308 = scmp.eq.s32.totalorder %s47, 0
      %p309 = por %p307, %p308
      %p310 = scmp.ne.s32.totalorder %s298, %s299
      %p311 = scmp.eq.s32.totalorder %s48, 1
      %p312 = por %p310, %p311
      %p314 = scmp.ne.s32.totalorder %s299, %s313
      %p315 = scmp.eq.s32.totalorder %s48, 0
      %p316 = por %p314, %p315
      %s318 = sadd.s32 %s317, 1
      %p321 = scmp.eq.s32.totalorder %s42, 1
      %p322 = scmp.ne.s32.totalorder %s317, %s319
      %p323 = scmp.eq.s32.totalorder %s42, 0
      %p324 = por %p322, %p323
      %p325 = scmp.ne.s32.totalorder %s317, %s319
      %p326 = scmp.eq.s32.totalorder %s47, 1
      %p327 = por %p325, %p326
      %p328 = scmp.ne.s32.totalorder %s319, %s320
      %p329 = scmp.eq.s32.totalorder %s47, 0
      %p330 = por %p328, %p329
      %p331 = scmp.ne.s32.totalorder %s319, %s320
      %p332 = scmp.eq.s32.totalorder %s48, 1
      %p333 = por %p331, %p332
      %p335 = scmp.ne.s32.totalorder %s320, %s334
      %p336 = scmp.eq.s32.totalorder %s48, 0
      %p337 = por %p335, %p336
      %s339 = sadd.s32 %s338, 1
      %p342 = scmp.eq.s32.totalorder %s42, 1
      %p343 = scmp.ne.s32.totalorder %s338, %s340
      %p344 = scmp.eq.s32.totalorder %s42, 0
      %p345 = por %p343, %p344
      %p346 = scmp.ne.s32.totalorder %s338, %s340
      %p347 = scmp.eq.s32.totalorder %s47, 1
      %p348 = por %p346, %p347
      %p349 = scmp.ne.s32.totalorder %s340, %s341
      %p350 = scmp.eq.s32.totalorder %s47, 0
      %p351 = por %p349, %p350
      %p352 = scmp.ne.s32.totalorder %s340, %s341
      %p353 = scmp.eq.s32.totalorder %s48, 1
      %p354 = por %p352, %p353
      %p356 = scmp.ne.s32.totalorder %s341, %s355
      %p357 = scmp.eq.s32.totalorder %s48, 0
      %p358 = por %p356, %p357
      %s360 = sadd.s32 %s359, 1
      %p363 = scmp.eq.s32.totalorder %s42, 1
      %p364 = scmp.ne.s32.totalorder %s359, %s361
      %p365 = scmp.eq.s32.totalorder %s42, 0
      %p366 = por %p364, %p365
      %p367 = scmp.ne.s32.totalorder %s359, %s361
      %p368 = scmp.eq.s32.totalorder %s47, 1
      %p369 = por %p367, %p368
      %p370 = scmp.ne.s32.totalorder %s361, %s362
      %p371 = scmp.eq.s32.totalorder %s47, 0
      %p372 = por %p370, %p371
      %p373 = scmp.ne.s32.totalorder %s361, %s362
      %p374 = scmp.eq.s32.totalorder %s48, 1
      %p375 = por %p373, %p374
      %p377 = scmp.ne.s32.totalorder %s362, %s376
      %p378 = scmp.eq.s32.totalorder %s48, 0
      %p379 = por %p377, %p378
      %s381 = sadd.s32 %s380, 1
      %p384 = scmp.eq.s32.totalorder %s42, 1
      %p385 = scmp.ne.s32.totalorder %s380, %s382
      %p386 = scmp.eq.s32.totalorder %s42, 0
      %p387 = por %p385, %p386
      %p388 = scmp.ne.s32.totalorder %s380, %s382
      %p389 = scmp.eq.s32.totalorder %s47, 1
      %p390 = por %p388, %p389
      %p391 = scmp.ne.s32.totalorder %s382, %s383
      %p392 = scmp.eq.s32.totalorder %s47, 0
      %p393 = por %p391, %p392
      %p394 = scmp.ne.s32.totalorder %s382, %s383
      %p395 = scmp.eq.s32.totalorder %s48, 1
      %p396 = por %p394, %p395
      %p398 = scmp.ne.s32.totalorder %s383, %s397
      %p399 = scmp.eq.s32.totalorder %s48, 0
      %p400 = por %p398, %p399
      %s402 = sadd.s32 %s401, 1
      %p405 = scmp.eq.s32.totalorder %s42, 1
      %p406 = scmp.ne.s32.totalorder %s401, %s403
      %p407 = scmp.eq.s32.totalorder %s42, 0
      %p408 = por %p406, %p407
      %p409 = scmp.ne.s32.totalorder %s401, %s403
      %p410 = scmp.eq.s32.totalorder %s47, 1
      %p411 = por %p409, %p410
      %p412 = scmp.ne.s32.totalorder %s403, %s404
      %p413 = scmp.eq.s32.totalorder %s47, 0
      %p414 = por %p412, %p413
      %p415 = scmp.ne.s32.totalorder %s403, %s404
      %p416 = scmp.eq.s32.totalorder %s48, 1
      %p417 = por %p415, %p416
      %p419 = scmp.ne.s32.totalorder %s404, %s418
      %p420 = scmp.eq.s32.totalorder %s48, 0
      %p421 = por %p419, %p420
      %s423 = sadd.s32 %s422, 1
      %p426 = scmp.eq.s32.totalorder %s42, 1
      %p427 = scmp.ne.s32.totalorder %s422, %s424
      %p428 = scmp.eq.s32.totalorder %s42, 0
      %p429 = por %p427, %p428
      %p430 = scmp.ne.s32.totalorder %s422, %s424
      %p431 = scmp.eq.s32.totalorder %s47, 1
      %p432 = por %p430, %p431
      %p433 = scmp.ne.s32.totalorder %s424, %s425
      %p434 = scmp.eq.s32.totalorder %s47, 0
      %p435 = por %p433, %p434
      %p436 = scmp.ne.s32.totalorder %s424, %s425
      %p437 = scmp.eq.s32.totalorder %s48, 1
      %p438 = por %p436, %p437
      %p440 = scmp.ne.s32.totalorder %s425, %s439
      %p441 = scmp.eq.s32.totalorder %s48, 0
      %p442 = por %p440, %p441
      %s444 = sadd.s32 %s443, 1
      %p447 = scmp.eq.s32.totalorder %s42, 1
      %p448 = scmp.ne.s32.totalorder %s443, %s445
      %p449 = scmp.eq.s32.totalorder %s42, 0
      %p450 = por %p448, %p449
      %p451 = scmp.ne.s32.totalorder %s443, %s445
      %p452 = scmp.eq.s32.totalorder %s47, 1
      %p453 = por %p451, %p452
      %p454 = scmp.ne.s32.totalorder %s445, %s446
      %p455 = scmp.eq.s32.totalorder %s47, 0
      %p456 = por %p454, %p455
      %p457 = scmp.ne.s32.totalorder %s445, %s446
      %p458 = scmp.eq.s32.totalorder %s48, 1
      %p459 = por %p457, %p458
      %p461 = scmp.ne.s32.totalorder %s446, %s460
      %p462 = scmp.eq.s32.totalorder %s48, 0
      %p463 = por %p461, %p462
      %s464 = ssub.s32 %s42, %s49
      %p465 = scmp.eq.s32.totalorder %s464, 0
      %s467 = sadd.s32 %s466, 1
      %s468 = scalar_select %p465, %s466, %s467
      %p471 = pneg %p465
      %p472 = scmp.eq.s32.totalorder %s42, 1
      %p473 = por %p471, %p472
      %p474 = scmp.ne.s32.totalorder %s466, %s469
      %p475 = scmp.eq.s32.totalorder %s42, 0
      %p476 = por %p474, %p475
      %p477 = scmp.ne.s32.totalorder %s466, %s469
      %p478 = scmp.eq.s32.totalorder %s47, 1
      %p479 = por %p477, %p478
      %p480 = scmp.ne.s32.totalorder %s469, %s470
      %p481 = scmp.eq.s32.totalorder %s47, 0
      %p482 = por %p480, %p481
      %p483 = scmp.ne.s32.totalorder %s469, %s470
      %p484 = scmp.eq.s32.totalorder %s48, 1
      %p485 = por %p483, %p484
      %p487 = scmp.ne.s32.totalorder %s470, %s486
      %p488 = scmp.eq.s32.totalorder %s48, 0
      %p489 = por %p487, %p488
      %p490 = scmp.le.s32.totalorder 1, %s42
      %p491 = scmp.lt.s32.totalorder %s42, 3
      %p492 = pnand %p490, %p491
      %p493 = pneg %p492
      // Predicated region
      $region9: #{tpu_custom_call.1} parent=5 // pred_check
        _
      $region10: #{tpu_custom_call.1} parent=5 // pred_check_branch
        %495 = sbr.rel (%p492) target = $region12
      $region11: #{tpu_custom_call.1} parent=5 // pred_region
        %s496 = ssub.s32 %s42, 1
        // Predicated region
        $region13: #{tpu_custom_call.1} parent=11 // pred_check
          %p497 = pneg %p141
        $region14: #{tpu_custom_call.1} parent=11 // pred_check_branch
          %499 = sbr.rel (%p497) target = $region16
        $region15: #{tpu_custom_call.1} parent=11 // pred_region
          %s501 = ssub.s32 256, 256
          %502 = vsyncadd [#allocation11], %s501
          %s503 = sshll.u32 [#allocation10], 4
          %s504 = int_to_ptr.vmem [resolvable:$true] %s503
          %509 = dma.hbm_to_vmem [thread:$0]  %s3, 256, %s504, [#allocation11], 64, 64, 4
        $region16: #{tpu_custom_call.1} parent=11 // pred_fallthru
          _
        // Predicated region
        $region17: #{tpu_custom_call.1} parent=11 // pred_check
          %p510 = pneg %p162
        $region18: #{tpu_custom_call.1} parent=11 // pred_check_branch
          %512 = sbr.rel (%p510) target = $region20
        $region19: #{tpu_custom_call.1} parent=11 // pred_region
          %s514 = ssub.s32 16, 16
          %515 = vsyncadd [#allocation11], %s514
          %s517 = sshll.u32 [#allocation12], 4
          %s518 = int_to_ptr.vmem [resolvable:$true] %s517
          %520 = dma.hbm_to_vmem [thread:$0]  %s4, 16, %s518, [#allocation11]
        $region20: #{tpu_custom_call.1} parent=11 // pred_fallthru
          _
        // Predicated region
        $region21: #{tpu_custom_call.1} parent=11 // pred_check
          %p521 = pneg %p183
        $region22: #{tpu_custom_call.1} parent=11 // pred_check_branch
          %523 = sbr.rel (%p521) target = $region24
        $region23: #{tpu_custom_call.1} parent=11 // pred_region
          %s525 = ssub.s32 256, 256
          %526 = vsyncadd [#allocation14], %s525
          %s527 = sshll.u32 [#allocation13], 4
          %s528 = int_to_ptr.vmem [resolvable:$true] %s527
          %533 = dma.hbm_to_vmem [thread:$0]  %s5, 256, %s528, [#allocation14], 64, 64, 4
        $region24: #{tpu_custom_call.1} parent=11 // pred_fallthru
          _
        // Predicated region
        $region25: #{tpu_custom_call.1} parent=11 // pred_check
          %p534 = pneg %p204
        $region26: #{tpu_custom_call.1} parent=11 // pred_check_branch
          %536 = sbr.rel (%p534) target = $region28
        $region27: #{tpu_custom_call.1} parent=11 // pred_region
          %s538 = ssub.s32 16, 16
          %539 = vsyncadd [#allocation14], %s538
          %s541 = sshll.u32 [#allocation15], 4
          %s542 = int_to_ptr.vmem [resolvable:$true] %s541
          %544 = dma.hbm_to_vmem [thread:$0]  %s6, 16, %s542, [#allocation14]
        $region28: #{tpu_custom_call.1} parent=11 // pred_fallthru
          _
        // Predicated region
        $region29: #{tpu_custom_call.1} parent=11 // pred_check
          %p545 = pneg %p225
        $region30: #{tpu_custom_call.1} parent=11 // pred_check_branch
          %547 = sbr.rel (%p545) target = $region32
        $region31: #{tpu_custom_call.1} parent=11 // pred_region
          %s549 = ssub.s32 256, 256
          %550 = vsyncadd [#allocation17], %s549
          %s551 = sshll.u32 [#allocation16], 4
          %s552 = int_to_ptr.vmem [resolvable:$true] %s551
          %557 = dma.hbm_to_vmem [thread:$0]  %s7, 256, %s552, [#allocation17], 64, 64, 4
        $region32: #{tpu_custom_call.1} parent=11 // pred_fallthru
          _
        // Predicated region
        $region33: #{tpu_custom_call.1} parent=11 // pred_check
          %p558 = pneg %p246
        $region34: #{tpu_custom_call.1} parent=11 // pred_check_branch
          %560 = sbr.rel (%p558) target = $region36
        $region35: #{tpu_custom_call.1} parent=11 // pred_region
          %s562 = ssub.s32 16, 16
          %563 = vsyncadd [#allocation17], %s562
          %s565 = sshll.u32 [#allocation18], 4
          %s566 = int_to_ptr.vmem [resolvable:$true] %s565
          %568 = dma.hbm_to_vmem [thread:$0]  %s8, 16, %s566, [#allocation17]
        $region36: #{tpu_custom_call.1} parent=11 // pred_fallthru
          _
        // Predicated region
        $region37: #{tpu_custom_call.1} parent=11 // pred_check
          %p569 = pneg %p267
        $region38: #{tpu_custom_call.1} parent=11 // pred_check_branch
          %571 = sbr.rel (%p569) target = $region40
        $region39: #{tpu_custom_call.1} parent=11 // pred_region
          %s573 = ssub.s32 256, 256
          %574 = vsyncadd [#allocation20], %s573
          %s575 = sshll.u32 [#allocation19], 4
          %s576 = int_to_ptr.vmem [resolvable:$true] %s575
          %581 = dma.hbm_to_vmem [thread:$0]  %s9, 256, %s576, [#allocation20], 64, 64, 4
        $region40: #{tpu_custom_call.1} parent=11 // pred_fallthru
          _
        // Predicated region
        $region41: #{tpu_custom_call.1} parent=11 // pred_check
          %p582 = pneg %p288
        $region42: #{tpu_custom_call.1} parent=11 // pred_check_branch
          %584 = sbr.rel (%p582) target = $region44
        $region43: #{tpu_custom_call.1} parent=11 // pred_region
          %s586 = ssub.s32 16, 16
          %587 = vsyncadd [#allocation20], %s586
          %s589 = sshll.u32 [#allocation21], 4
          %s590 = int_to_ptr.vmem [resolvable:$true] %s589
          %592 = dma.hbm_to_vmem [thread:$0]  %s10, 16, %s590, [#allocation20]
        $region44: #{tpu_custom_call.1} parent=11 // pred_fallthru
          _
        // Predicated region
        $region45: #{tpu_custom_call.1} parent=11 // pred_check
          %p593 = pneg %p309
        $region46: #{tpu_custom_call.1} parent=11 // pred_check_branch
          %595 = sbr.rel (%p593) target = $region48
        $region47: #{tpu_custom_call.1} parent=11 // pred_region
          %s597 = ssub.s32 16, 16
          %598 = vsyncadd [#allocation23], %s597
          %s600 = sshll.u32 [#allocation22], 4
          %s601 = int_to_ptr.vmem [resolvable:$true] %s600
          %603 = dma.hbm_to_vmem [thread:$0]  %s11, 16, %s601, [#allocation23]
        $region48: #{tpu_custom_call.1} parent=11 // pred_fallthru
          _
        // Predicated region
        $region49: #{tpu_custom_call.1} parent=11 // pred_check
          %p604 = pneg %p330
        $region50: #{tpu_custom_call.1} parent=11 // pred_check_branch
          %606 = sbr.rel (%p604) target = $region52
        $region51: #{tpu_custom_call.1} parent=11 // pred_region
          %s608 = ssub.s32 16, 16
          %609 = vsyncadd [#allocation23], %s608
          %s611 = sshll.u32 [#allocation24], 4
          %s612 = int_to_ptr.vmem [resolvable:$true] %s611
          %614 = dma.hbm_to_vmem [thread:$0]  %s12, 16, %s612, [#allocation23]
        $region52: #{tpu_custom_call.1} parent=11 // pred_fallthru
          _
        // Predicated region
        $region53: #{tpu_custom_call.1} parent=11 // pred_check
          %p615 = pneg %p351
        $region54: #{tpu_custom_call.1} parent=11 // pred_check_branch
          %617 = sbr.rel (%p615) target = $region56
        $region55: #{tpu_custom_call.1} parent=11 // pred_region
          %s619 = ssub.s32 256, 256
          %620 = vsyncadd [#allocation26], %s619
          %s621 = sshll.u32 [#allocation25], 4
          %s622 = int_to_ptr.vmem [resolvable:$true] %s621
          %627 = dma.hbm_to_vmem [thread:$0]  %s13, 256, %s622, [#allocation26], 64, 64, 4
        $region56: #{tpu_custom_call.1} parent=11 // pred_fallthru
          _
        // Predicated region
        $region57: #{tpu_custom_call.1} parent=11 // pred_check
          %p628 = pneg %p372
        $region58: #{tpu_custom_call.1} parent=11 // pred_check_branch
          %630 = sbr.rel (%p628) target = $region60
        $region59: #{tpu_custom_call.1} parent=11 // pred_region
          %s632 = ssub.s32 16, 16
          %633 = vsyncadd [#allocation26], %s632
          %s635 = sshll.u32 [#allocation27], 4
          %s636 = int_to_ptr.vmem [resolvable:$true] %s635
          %638 = dma.hbm_to_vmem [thread:$0]  %s14, 16, %s636, [#allocation26]
        $region60: #{tpu_custom_call.1} parent=11 // pred_fallthru
          _
        // Predicated region
        $region61: #{tpu_custom_call.1} parent=11 // pred_check
          %p639 = pneg %p393
        $region62: #{tpu_custom_call.1} parent=11 // pred_check_branch
          %641 = sbr.rel (%p639) target = $region64
        $region63: #{tpu_custom_call.1} parent=11 // pred_region
          %s643 = ssub.s32 512, 512
          %644 = vsyncadd [#allocation29], %s643
          %s645 = sshll.u32 [#allocation28], 4
          %s646 = int_to_ptr.vmem [resolvable:$true] %s645
          %651 = dma.hbm_to_vmem [thread:$0]  %s15, 512, %s646, [#allocation29], 64, 64, 4
        $region64: #{tpu_custom_call.1} parent=11 // pred_fallthru
          _
        // Predicated region
        $region65: #{tpu_custom_call.1} parent=11 // pred_check
          %p652 = pneg %p414
        $region66: #{tpu_custom_call.1} parent=11 // pred_check_branch
          %654 = sbr.rel (%p652) target = $region68
        $region67: #{tpu_custom_call.1} parent=11 // pred_region
          %s656 = ssub.s32 16, 16
          %657 = vsyncadd [#allocation29], %s656
          %s659 = sshll.u32 [#allocation30], 4
          %s660 = int_to_ptr.vmem [resolvable:$true] %s659
          %662 = dma.hbm_to_vmem [thread:$0]  %s16, 16, %s660, [#allocation29]
        $region68: #{tpu_custom_call.1} parent=11 // pred_fallthru
          _
        // Predicated region
        $region69: #{tpu_custom_call.1} parent=11 // pred_check
          %p663 = pneg %p435
        $region70: #{tpu_custom_call.1} parent=11 // pred_check_branch
          %665 = sbr.rel (%p663) target = $region72
        $region71: #{tpu_custom_call.1} parent=11 // pred_region
          %s667 = ssub.s32 16, 16
          %668 = vsyncadd [#allocation32], %s667
          %s670 = sshll.u32 [#allocation31], 4
          %s671 = int_to_ptr.vmem [resolvable:$true] %s670
          %673 = dma.hbm_to_vmem [thread:$0]  %s17, 16, %s671, [#allocation32]
        $region72: #{tpu_custom_call.1} parent=11 // pred_fallthru
          _
        // Predicated region
        $region73: #{tpu_custom_call.1} parent=11 // pred_check
          %p674 = pneg %p456
        $region74: #{tpu_custom_call.1} parent=11 // pred_check_branch
          %676 = sbr.rel (%p674) target = $region76
        $region75: #{tpu_custom_call.1} parent=11 // pred_region
          %s678 = ssub.s32 16, 16
          %679 = vsyncadd [#allocation32], %s678
          %s681 = sshll.u32 [#allocation33], 4
          %s682 = int_to_ptr.vmem [resolvable:$true] %s681
          %684 = dma.hbm_to_vmem [thread:$0]  %s18, 16, %s682, [#allocation32]
        $region76: #{tpu_custom_call.1} parent=11 // pred_fallthru
          _
      $region12: #{tpu_custom_call.1} parent=5 // pred_fallthru
        _
      %p685 = scmp.lt.s32.totalorder %s42, 2
      // Predicated region
      $region77: #{tpu_custom_call.1} parent=5 // pred_check
        %p686 = pneg %p685
      $region78: #{tpu_custom_call.1} parent=5 // pred_check_branch
        %688 = sbr.rel (%p686) target = $region80
      $region79: #{tpu_custom_call.1} parent=5 // pred_region
        // Predicated region
        $region81: #{tpu_custom_call.1} parent=79 // pred_check
          %p689 = pneg %p62
        $region82: #{tpu_custom_call.1} parent=79 // pred_check_branch
          %691 = sbr.rel (%p689) target = $region84
        $region83: #{tpu_custom_call.1} parent=79 // pred_region
          %s692 = sand.u32 %s52, 1
          %s693 = scalar_lea.sflag [#allocation5], %s692
          %s694 = sand.u32 %s52, 1
          %s695 = smul.addr %s694, 4
          %s696 = scalar_lea.vmem [#allocation4], %s695
          %s698 = ssub.s32 64, 64
          %699 = vsyncadd %s693, %s698
          %s700 = smul.addr %s42, 64
          %s701 = scalar_lea.hbm %s0, %s700
          %s703 = sshll.u32 %s696, 4
          %s704 = int_to_ptr.vmem [resolvable:$true] %s703
          %706 = dma.hbm_to_vmem [thread:$0]  %s701, 64, %s704, %s693
        $region84: #{tpu_custom_call.1} parent=79 // pred_fallthru
          _
        // Predicated region
        $region85: #{tpu_custom_call.1} parent=79 // pred_check
          %p707 = pneg %p88
        $region86: #{tpu_custom_call.1} parent=79 // pred_check_branch
          %709 = sbr.rel (%p707) target = $region88
        $region87: #{tpu_custom_call.1} parent=79 // pred_region
          %s710 = sand.u32 %s42, 1
          %s711 = scalar_lea.sflag [#allocation8], %s710
          %s712 = sand.u32 %s78, 1
          %s713 = scalar_lea.vmem [#allocation7], %s712
          %s715 = ssub.s32 16, 16
          %716 = vsyncadd %s711, %s715
          %s717 = smul.addr %s42, 16
          %s718 = scalar_lea.hbm %s1, %s717
          %s720 = sshll.u32 %s713, 4
          %s721 = int_to_ptr.vmem [resolvable:$true] %s720
          %723 = dma.hbm_to_vmem [thread:$0]  %s718, 16, %s721, %s711
        $region88: #{tpu_custom_call.1} parent=79 // pred_fallthru
          _
        // Predicated region
        $region89: #{tpu_custom_call.1} parent=79 // pred_check
          %p724 = pneg %p114
        $region90: #{tpu_custom_call.1} parent=79 // pred_check_branch
          %726 = sbr.rel (%p724) target = $region92
        $region91: #{tpu_custom_call.1} parent=79 // pred_region
          %s727 = sand.u32 %s42, 1
          %s728 = scalar_lea.sflag [#allocation8], %s727
          %s729 = sand.u32 %s104, 1
          %s730 = smul.addr %s729, 8
          %s731 = scalar_lea.vmem [#allocation9], %s730
          %s733 = ssub.s32 128, 128
          %734 = vsyncadd %s728, %s733
          %s735 = smul.addr %s42, 128
          %s736 = scalar_lea.hbm %s2, %s735
          %s738 = sshll.u32 %s731, 4
          %s739 = int_to_ptr.vmem [resolvable:$true] %s738
          %741 = dma.hbm_to_vmem [thread:$0]  %s736, 128, %s739, %s728
        $region92: #{tpu_custom_call.1} parent=79 // pred_fallthru
          _
      $region80: #{tpu_custom_call.1} parent=5 // pred_fallthru
        _
      %p742 = scmp.le.s32.totalorder 1, %s42
      %p743 = scmp.lt.s32.totalorder %s42, 3
      %p744 = pnand %p742, %p743
      %p745 = pneg %p744
      // Predicated region
      $region93: #{tpu_custom_call.1} parent=5 // pred_check
        _
      $region94: #{tpu_custom_call.1} parent=5 // pred_check_branch
        %747 = sbr.rel (%p744) target = $region96
      $region95: #{tpu_custom_call.1} parent=5 // pred_region
        %s748 = ssub.s32 %s42, 1
        %s749 = sand.u32 %s55, 1
        %s750 = scalar_lea.sflag [#allocation5], %s749
        %s751 = sand.u32 %s55, 1
        %s752 = smul.addr %s751, 4
        %s753 = scalar_lea.vmem [#allocation4], %s752
        // Predicated region
        $region97: #{tpu_custom_call.1} parent=95 // pred_check
          %p754 = pneg %p68
        $region98: #{tpu_custom_call.1} parent=95 // pred_check_branch
          %756 = sbr.rel (%p754) target = $region100
        $region99: #{tpu_custom_call.1} parent=95 // pred_region
          %757 = dma.done %s750, 64
        $region100: #{tpu_custom_call.1} parent=95 // pred_fallthru
          _
        %s758 = sand.u32 %s47, 1
        %s759 = scalar_lea.sflag [#allocation8], %s758
        %s760 = sand.u32 %s81, 1
        %s761 = scalar_lea.vmem [#allocation7], %s760
        // Predicated region
        $region101: #{tpu_custom_call.1} parent=95 // pred_check
          %p762 = pneg %p94
        $region102: #{tpu_custom_call.1} parent=95 // pred_check_branch
          %764 = sbr.rel (%p762) target = $region104
        $region103: #{tpu_custom_call.1} parent=95 // pred_region
          %765 = dma.done %s759, 16
        $region104: #{tpu_custom_call.1} parent=95 // pred_fallthru
          _
        %s766 = sand.u32 %s47, 1
        %s767 = scalar_lea.sflag [#allocation8], %s766
        %s768 = sand.u32 %s107, 1
        %s769 = smul.addr %s768, 8
        %s770 = scalar_lea.vmem [#allocation9], %s769
        // Predicated region
        $region105: #{tpu_custom_call.1} parent=95 // pred_check
          %p771 = pneg %p120
        $region106: #{tpu_custom_call.1} parent=95 // pred_check_branch
          %773 = sbr.rel (%p771) target = $region108
        $region107: #{tpu_custom_call.1} parent=95 // pred_region
          %774 = dma.done %s767, 128
        $region108: #{tpu_custom_call.1} parent=95 // pred_fallthru
          _
        // Predicated region
        $region109: #{tpu_custom_call.1} parent=95 // pred_check
          %p775 = pneg %p141
        $region110: #{tpu_custom_call.1} parent=95 // pred_check_branch
          %777 = sbr.rel (%p775) target = $region112
        $region111: #{tpu_custom_call.1} parent=95 // pred_region
          %778 = dma.done [#allocation11], 256
        $region112: #{tpu_custom_call.1} parent=95 // pred_fallthru
          _
        // Predicated region
        $region113: #{tpu_custom_call.1} parent=95 // pred_check
          %p779 = pneg %p162
        $region114: #{tpu_custom_call.1} parent=95 // pred_check_branch
          %781 = sbr.rel (%p779) target = $region116
        $region115: #{tpu_custom_call.1} parent=95 // pred_region
          %782 = dma.done [#allocation11], 16
        $region116: #{tpu_custom_call.1} parent=95 // pred_fallthru
          _
        // Predicated region
        $region117: #{tpu_custom_call.1} parent=95 // pred_check
          %p783 = pneg %p183
        $region118: #{tpu_custom_call.1} parent=95 // pred_check_branch
          %785 = sbr.rel (%p783) target = $region120
        $region119: #{tpu_custom_call.1} parent=95 // pred_region
          %786 = dma.done [#allocation14], 256
        $region120: #{tpu_custom_call.1} parent=95 // pred_fallthru
          _
        // Predicated region
        $region121: #{tpu_custom_call.1} parent=95 // pred_check
          %p787 = pneg %p204
        $region122: #{tpu_custom_call.1} parent=95 // pred_check_branch
          %789 = sbr.rel (%p787) target = $region124
        $region123: #{tpu_custom_call.1} parent=95 // pred_region
          %790 = dma.done [#allocation14], 16
        $region124: #{tpu_custom_call.1} parent=95 // pred_fallthru
          _
        // Predicated region
        $region125: #{tpu_custom_call.1} parent=95 // pred_check
          %p791 = pneg %p225
        $region126: #{tpu_custom_call.1} parent=95 // pred_check_branch
          %793 = sbr.rel (%p791) target = $region128
        $region127: #{tpu_custom_call.1} parent=95 // pred_region
          %794 = dma.done [#allocation17], 256
        $region128: #{tpu_custom_call.1} parent=95 // pred_fallthru
          _
        // Predicated region
        $region129: #{tpu_custom_call.1} parent=95 // pred_check
          %p795 = pneg %p246
        $region130: #{tpu_custom_call.1} parent=95 // pred_check_branch
          %797 = sbr.rel (%p795) target = $region132
        $region131: #{tpu_custom_call.1} parent=95 // pred_region
          %798 = dma.done [#allocation17], 16
        $region132: #{tpu_custom_call.1} parent=95 // pred_fallthru
          _
        // Predicated region
        $region133: #{tpu_custom_call.1} parent=95 // pred_check
          %p799 = pneg %p267
        $region134: #{tpu_custom_call.1} parent=95 // pred_check_branch
          %801 = sbr.rel (%p799) target = $region136
        $region135: #{tpu_custom_call.1} parent=95 // pred_region
          %802 = dma.done [#allocation20], 256
        $region136: #{tpu_custom_call.1} parent=95 // pred_fallthru
          _
        // Predicated region
        $region137: #{tpu_custom_call.1} parent=95 // pred_check
          %p803 = pneg %p288
        $region138: #{tpu_custom_call.1} parent=95 // pred_check_branch
          %805 = sbr.rel (%p803) target = $region140
        $region139: #{tpu_custom_call.1} parent=95 // pred_region
          %806 = dma.done [#allocation20], 16
        $region140: #{tpu_custom_call.1} parent=95 // pred_fallthru
          _
        // Predicated region
        $region141: #{tpu_custom_call.1} parent=95 // pred_check
          %p807 = pneg %p309
        $region142: #{tpu_custom_call.1} parent=95 // pred_check_branch
          %809 = sbr.rel (%p807) target = $region144
        $region143: #{tpu_custom_call.1} parent=95 // pred_region
          %810 = dma.done [#allocation23], 16
        $region144: #{tpu_custom_call.1} parent=95 // pred_fallthru
          _
        // Predicated region
        $region145: #{tpu_custom_call.1} parent=95 // pred_check
          %p811 = pneg %p330
        $region146: #{tpu_custom_call.1} parent=95 // pred_check_branch
          %813 = sbr.rel (%p811) target = $region148
        $region147: #{tpu_custom_call.1} parent=95 // pred_region
          %814 = dma.done [#allocation23], 16
        $region148: #{tpu_custom_call.1} parent=95 // pred_fallthru
          _
        // Predicated region
        $region149: #{tpu_custom_call.1} parent=95 // pred_check
          %p815 = pneg %p351
        $region150: #{tpu_custom_call.1} parent=95 // pred_check_branch
          %817 = sbr.rel (%p815) target = $region152
        $region151: #{tpu_custom_call.1} parent=95 // pred_region
          %818 = dma.done [#allocation26], 256
        $region152: #{tpu_custom_call.1} parent=95 // pred_fallthru
          _
        // Predicated region
        $region153: #{tpu_custom_call.1} parent=95 // pred_check
          %p819 = pneg %p372
        $region154: #{tpu_custom_call.1} parent=95 // pred_check_branch
          %821 = sbr.rel (%p819) target = $region156
        $region155: #{tpu_custom_call.1} parent=95 // pred_region
          %822 = dma.done [#allocation26], 16
        $region156: #{tpu_custom_call.1} parent=95 // pred_fallthru
          _
        // Predicated region
        $region157: #{tpu_custom_call.1} parent=95 // pred_check
          %p823 = pneg %p393
        $region158: #{tpu_custom_call.1} parent=95 // pred_check_branch
          %825 = sbr.rel (%p823) target = $region160
        $region159: #{tpu_custom_call.1} parent=95 // pred_region
          %826 = dma.done [#allocation29], 512
        $region160: #{tpu_custom_call.1} parent=95 // pred_fallthru
          _
        // Predicated region
        $region161: #{tpu_custom_call.1} parent=95 // pred_check
          %p827 = pneg %p414
        $region162: #{tpu_custom_call.1} parent=95 // pred_check_branch
          %829 = sbr.rel (%p827) target = $region164
        $region163: #{tpu_custom_call.1} parent=95 // pred_region
          %830 = dma.done [#allocation29], 16
        $region164: #{tpu_custom_call.1} parent=95 // pred_fallthru
          _
        // Predicated region
        $region165: #{tpu_custom_call.1} parent=95 // pred_check
          %p831 = pneg %p435
        $region166: #{tpu_custom_call.1} parent=95 // pred_check_branch
          %833 = sbr.rel (%p831) target = $region168
        $region167: #{tpu_custom_call.1} parent=95 // pred_region
          %834 = dma.done [#allocation32], 16
        $region168: #{tpu_custom_call.1} parent=95 // pred_fallthru
          _
        // Predicated region
        $region169: #{tpu_custom_call.1} parent=95 // pred_check
          %p835 = pneg %p456
        $region170: #{tpu_custom_call.1} parent=95 // pred_check_branch
          %837 = sbr.rel (%p835) target = $region172
        $region171: #{tpu_custom_call.1} parent=95 // pred_region
          %838 = dma.done [#allocation32], 16
        $region172: #{tpu_custom_call.1} parent=95 // pred_fallthru
          _
        %s839 = sand.u32 %s55, 1
        %s840 = scalar_lea.sflag [#allocation5], %s839
        %s841 = sand.u32 %s55, 1
        %s842 = smul.addr %s841, 4
        %s843 = scalar_lea.vmem [#allocation4], %s842
        %p844 = pneg %p68
        %p845 = pneg %p65
        %s846 = sand.u32 %s47, 1
        %s847 = scalar_lea.sflag [#allocation8], %s846
        %s848 = sand.u32 %s81, 1
        %s849 = scalar_lea.vmem [#allocation7], %s848
        %p850 = pneg %p94
        %p851 = pneg %p91
        %s852 = sand.u32 %s47, 1
        %s853 = scalar_lea.sflag [#allocation8], %s852
        %s854 = sand.u32 %s107, 1
        %s855 = smul.addr %s854, 8
        %s856 = scalar_lea.vmem [#allocation9], %s855
        %p857 = pneg %p120
        %p858 = pneg %p117
        %p859 = pneg %p141
        %p860 = pneg %p138
        %p861 = pneg %p162
        %p862 = pneg %p159
        %p863 = pneg %p183
        %p864 = pneg %p180
        %p865 = pneg %p204
        %p866 = pneg %p201
        %p867 = pneg %p225
        %p868 = pneg %p222
        %p869 = pneg %p246
        %p870 = pneg %p243
        %p871 = pneg %p267
        %p872 = pneg %p264
        %p873 = pneg %p288
        %p874 = pneg %p285
        %p875 = pneg %p309
        %p876 = pneg %p306
        %p877 = pneg %p330
        %p878 = pneg %p327
        %p879 = pneg %p351
        %p880 = pneg %p348
        %p881 = pneg %p372
        %p882 = pneg %p369
        %p883 = pneg %p393
        %p884 = pneg %p390
        %p885 = pneg %p414
        %p886 = pneg %p411
        %p887 = pneg %p435
        %p888 = pneg %p432
        %p889 = pneg %p456
        %p890 = pneg %p453
        %p891 = pneg %p482
        %p892 = pneg %p479
        %s893 = sand.u32 %s469, 1
        %s894 = scalar_lea.sflag [#allocation6], %s893
        %s895 = sand.u32 %s469, 1
        %s896 = scalar_lea.vmem [#allocation34], %s895
        %v898 = vld [vmem:[%s753] sm:$0xf]
        %v899 = vld [vmem:[%s761] sm:$0x1]
        %v900 = vsub.f32 %v899, 1.0
        %v901 = vmul.f32 %v900, 1e+09
        %v902 = vld [vmem:[#allocation10] sm:$0xf]
        %v903 = vld [vmem:[#allocation10 + $0x4] sm:$0xf]
        %v904 = vld [vmem:[#allocation10 + $0x8] sm:$0xf]
        %v905 = vld [vmem:[#allocation10 + $0xc] sm:$0xf]
        %v906 = vld [vmem:[#allocation12] sm:$0x1]
        %v908 = vlaneseq
        %v909 = vshrl.u32 %v908, 7
        %v910 = vsub.s32 0, %v909
        %v911 = vrot.slane %v906, %v910
        %v917 = vunpack.c.l.b16 %v902
        %v918 = vunpack.c.l.b16 %v903
        %v919 = vunpack.c.l.b16 %v904
        %v920 = vunpack.c.l.b16 %v905
        %v921 = vpack.c.b16 %v918, %v917
        %v922 = vpack.c.b16 %v920, %v919
        %vm925 = vcmask 261120
        %v927 = vsel %vm925, %v898, 0
        %929 = vmatprep.subr.bf16.mxu0 0
        %930 = vmatpush1.bf16.msra.mxu0 %v921
        %931 = vmatprep.subr.bf16.mxu0 0
        %932 = vmatpush1.bf16.msra.mxu0 %v922
        %933 = vmatprep.subr.bf16.mxu0 0
        %934 = vmatpush1.bf16.msra.mxu0 0
        %935 = vmatprep.subr.bf16.mxu0 0
        %936 = vmatpush1.bf16.msra.mxu0 0
        %937 = vmatprep.subr.bf16.mxu0 0
        %938 = vmatpush1.bf16.msra.mxu0 0
        %939 = vmatprep.subr.bf16.mxu0 0
        %940 = vmatpush1.bf16.msra.mxu0 0
        %941 = vmatprep.subr.bf16.mxu0 0
        %942 = vmatpush1.bf16.msra.mxu0 0
        %943 = vmatprep.subr.bf16.mxu0 0
        %944 = vmatpush1.bf16.msra.mxu0 0
        %945 = vmatprep.subr.bf16.mxu0 0
        %946 = vmatpush1.bf16.msra.mxu0 0
        %947 = vmatprep.subr.bf16.mxu0 0
        %948 = vmatpush1.bf16.msra.mxu0 0
        %949 = vmatprep.subr.bf16.mxu0 0
        %950 = vmatpush1.bf16.msra.mxu0 0
        %951 = vmatprep.subr.bf16.mxu0 0
        %952 = vmatpush1.bf16.msra.mxu0 0
        %953 = vmatprep.subr.bf16.mxu0 0
        %954 = vmatpush1.bf16.msra.mxu0 0
        %955 = vmatprep.subr.bf16.mxu0 0
        %956 = vmatpush1.bf16.msra.mxu0 0
        %957 = vmatprep.subr.bf16.mxu0 0
        %958 = vmatpush1.bf16.msra.mxu0 0
        %959 = vmatprep.subr.bf16.mxu0 0
        %960 = vmatpush1.bf16.msra.mxu0 0
        %961 = vmatprep.mubr.bf16.mxu0 0
        %962 = vmatmul.mubr.bf16.gmra.mrb[0].mxu0 %v927
        %v963 = vpop.f32.mrb[0].mxu0
        %v964 = vadd.f32 %v911, %v963
        %v965 = vpop.f32.mrb[0].mxu0
        %v966 = vpop.f32.mrb[0].mxu0
        %v967 = vpop.f32.mrb[0].mxu0
        %968 = vdwg.mxu0
        %v969 = vpack.c.bf16 %v964, %v964
        %v970 = vld [vmem:[#allocation13] sm:$0xf]
        %v971 = vld [vmem:[#allocation13 + $0x4] sm:$0xf]
        %v972 = vld [vmem:[#allocation13 + $0x8] sm:$0xf]
        %v973 = vld [vmem:[#allocation13 + $0xc] sm:$0xf]
        %v974 = vld [vmem:[#allocation15] sm:$0x1]
        %v976 = vlaneseq
        %v977 = vshrl.u32 %v976, 7
        %v978 = vsub.s32 0, %v977
        %v979 = vrot.slane %v974, %v978
        %v985 = vunpack.c.l.b16 %v970
        %v986 = vunpack.c.l.b16 %v971
        %v987 = vunpack.c.l.b16 %v972
        %v988 = vunpack.c.l.b16 %v973
        %v989 = vpack.c.b16 %v986, %v985
        %v990 = vpack.c.b16 %v988, %v987
        %993 = vmatprep.subr.bf16.mxu0 0
        %994 = vmatpush1.bf16.msra.mxu0 %v989
        %995 = vmatprep.subr.bf16.mxu0 0
        %996 = vmatpush1.bf16.msra.mxu0 %v990
        %997 = vmatprep.subr.bf16.mxu0 0
        %998 = vmatpush1.bf16.msra.mxu0 0
        %999 = vmatprep.subr.bf16.mxu0 0
        %1000 = vmatpush1.bf16.msra.mxu0 0
        %1001 = vmatprep.subr.bf16.mxu0 0
        %1002 = vmatpush1.bf16.msra.mxu0 0
        %1003 = vmatprep.subr.bf16.mxu0 0
        %1004 = vmatpush1.bf16.msra.mxu0 0
        %1005 = vmatprep.subr.bf16.mxu0 0
        %1006 = vmatpush1.bf16.msra.mxu0 0
        %1007 = vmatprep.subr.bf16.mxu0 0
        %1008 = vmatpush1.bf16.msra.mxu0 0
        %1009 = vmatprep.subr.bf16.mxu0 0
        %1010 = vmatpush1.bf16.msra.mxu0 0
        %1011 = vmatprep.subr.bf16.mxu0 0
        %1012 = vmatpush1.bf16.msra.mxu0 0
        %1013 = vmatprep.subr.bf16.mxu0 0
        %1014 = vmatpush1.bf16.msra.mxu0 0
        %1015 = vmatprep.subr.bf16.mxu0 0
        %1016 = vmatpush1.bf16.msra.mxu0 0
        %1017 = vmatprep.subr.bf16.mxu0 0
        %1018 = vmatpush1.bf16.msra.mxu0 0
        %1019 = vmatprep.subr.bf16.mxu0 0
        %1020 = vmatpush1.bf16.msra.mxu0 0
        %1021 = vmatprep.subr.bf16.mxu0 0
        %1022 = vmatpush1.bf16.msra.mxu0 0
        %1023 = vmatprep.subr.bf16.mxu0 0
        %1024 = vmatpush1.bf16.msra.mxu0 0
        %1025 = vmatprep.mubr.bf16.mxu0 0
        %1026 = vmatmul.mubr.bf16.gmra.mrb[0].mxu0 %v927
        %v1027 = vpop.f32.mrb[0].mxu0
        %v1028 = vadd.f32 %v979, %v1027
        %v1029 = vpop.f32.mrb[0].mxu0
        %v1030 = vpop.f32.mrb[0].mxu0
        %v1031 = vpop.f32.mrb[0].mxu0
        %1032 = vdwg.mxu0
        %v1033 = vpack.c.bf16 %v1028, %v1028
        %v1034 = vld [vmem:[#allocation16] sm:$0xf]
        %v1035 = vld [vmem:[#allocation16 + $0x4] sm:$0xf]
        %v1036 = vld [vmem:[#allocation16 + $0x8] sm:$0xf]
        %v1037 = vld [vmem:[#allocation16 + $0xc] sm:$0xf]
        %v1038 = vld [vmem:[#allocation18] sm:$0x1]
        %v1040 = vlaneseq
        %v1041 = vshrl.u32 %v1040, 7
        %v1042 = vsub.s32 0, %v1041
        %v1043 = vrot.slane %v1038, %v1042
        %v1049 = vunpack.c.l.b16 %v1034
        %v1050 = vunpack.c.l.b16 %v1035
        %v1051 = vunpack.c.l.b16 %v1036
        %v1052 = vunpack.c.l.b16 %v1037
        %v1053 = vpack.c.b16 %v1050, %v1049
        %v1054 = vpack.c.b16 %v1052, %v1051
        %1057 = vmatprep.subr.bf16.mxu0 0
        %1058 = vmatpush1.bf16.msra.mxu0 %v1053
        %1059 = vmatprep.subr.bf16.mxu0 0
        %1060 = vmatpush1.bf16.msra.mxu0 %v1054
        %1061 = vmatprep.subr.bf16.mxu0 0
        %1062 = vmatpush1.bf16.msra.mxu0 0
        %1063 = vmatprep.subr.bf16.mxu0 0
        %1064 = vmatpush1.bf16.msra.mxu0 0
        %1065 = vmatprep.subr.bf16.mxu0 0
        %1066 = vmatpush1.bf16.msra.mxu0 0
        %1067 = vmatprep.subr.bf16.mxu0 0
        %1068 = vmatpush1.bf16.msra.mxu0 0
        %1069 = vmatprep.subr.bf16.mxu0 0
        %1070 = vmatpush1.bf16.msra.mxu0 0
        %1071 = vmatprep.subr.bf16.mxu0 0
        %1072 = vmatpush1.bf16.msra.mxu0 0
        %1073 = vmatprep.subr.bf16.mxu0 0
        %1074 = vmatpush1.bf16.msra.mxu0 0
        %1075 = vmatprep.subr.bf16.mxu0 0
        %1076 = vmatpush1.bf16.msra.mxu0 0
        %1077 = vmatprep.subr.bf16.mxu0 0
        %1078 = vmatpush1.bf16.msra.mxu0 0
        %1079 = vmatprep.subr.bf16.mxu0 0
        %1080 = vmatpush1.bf16.msra.mxu0 0
        %1081 = vmatprep.subr.bf16.mxu0 0
        %1082 = vmatpush1.bf16.msra.mxu0 0
        %1083 = vmatprep.subr.bf16.mxu0 0
        %1084 = vmatpush1.bf16.msra.mxu0 0
        %1085 = vmatprep.subr.bf16.mxu0 0
        %1086 = vmatpush1.bf16.msra.mxu0 0
        %1087 = vmatprep.subr.bf16.mxu0 0
        %1088 = vmatpush1.bf16.msra.mxu0 0
        %1089 = vmatprep.mubr.bf16.mxu0 0
        %1090 = vmatmul.mubr.bf16.gmra.mrb[0].mxu0 %v927
        %v1091 = vpop.f32.mrb[0].mxu0
        %v1092 = vadd.f32 %v1043, %v1091
        %v1093 = vpop.f32.mrb[0].mxu0
        %v1094 = vpop.f32.mrb[0].mxu0
        %v1095 = vpop.f32.mrb[0].mxu0
        %1096 = vdwg.mxu0
        %v1097 = vpack.c.bf16 %v1092, %v1092
        %v1099 = vlaneseq
        %v1100 = vshrl.u32 %v1099, 7
        %v1101 = vsub.s32 0, %v1100
        %v1102 = vrot.slane %v901, %v1101
        %vm1104 = vcmask 130048
        %v1106 = vsel %vm1104, %v969, 0
        %v1109 = vsel %vm1104, %v1033, 0
        %1111 = vmatprep.subr.bf16.mxu0 0
        %1112 = vmatpush1.bf16.xpose.msra.mxu0 %v1109
        %1113 = vmatprep.subr.bf16.mxu0 0
        %1114 = vmatpush1.bf16.xpose.msra.mxu0 0
        %1115 = vmatprep.subr.bf16.mxu0 0
        %1116 = vmatpush1.bf16.xpose.msra.mxu0 0
        %1117 = vmatprep.subr.bf16.mxu0 0
        %1118 = vmatpush1.bf16.xpose.msra.mxu0 0
        %1119 = vmatprep.subr.bf16.mxu0 0
        %1120 = vmatpush1.bf16.xpose.msra.mxu0 0
        %1121 = vmatprep.subr.bf16.mxu0 0
        %1122 = vmatpush1.bf16.xpose.msra.mxu0 0
        %1123 = vmatprep.subr.bf16.mxu0 0
        %1124 = vmatpush1.bf16.xpose.msra.mxu0 0
        %1125 = vmatprep.subr.bf16.mxu0 0
        %1126 = vmatpush1.bf16.xpose.msra.mxu0 0
        %1127 = vmatprep.subr.bf16.mxu0 0
        %1128 = vmatpush1.bf16.xpose.msra.mxu0 0
        %1129 = vmatprep.subr.bf16.mxu0 0
        %1130 = vmatpush1.bf16.xpose.msra.mxu0 0
        %1131 = vmatprep.subr.bf16.mxu0 0
        %1132 = vmatpush1.bf16.xpose.msra.mxu0 0
        %1133 = vmatprep.subr.bf16.mxu0 0
        %1134 = vmatpush1.bf16.xpose.msra.mxu0 0
        %1135 = vmatprep.subr.bf16.mxu0 0
        %1136 = vmatpush1.bf16.xpose.msra.mxu0 0
        %1137 = vmatprep.subr.bf16.mxu0 0
        %1138 = vmatpush1.bf16.xpose.msra.mxu0 0
        %1139 = vmatprep.subr.bf16.mxu0 0
        %1140 = vmatpush1.bf16.xpose.msra.mxu0 0
        %1141 = vmatprep.subr.bf16.mxu0 0
        %1142 = vmatpush1.bf16.xpose.msra.mxu0 0
        %1143 = vmatprep.mubr.bf16.mxu0 0
        %1144 = vmatmul.mubr.bf16.gmra.mrb[0].mxu0 %v1106
        %v1145 = vpop.f32.mrb[0].mxu0
        %v1146 = vadd.f32 %v1102, %v1145
        %v1147 = vpop.f32.mrb[0].mxu0
        %v1148 = vpop.f32.mrb[0].mxu0
        %v1149 = vpop.f32.mrb[0].mxu0
        %1150 = vdwg.mxu0
        %vm1151 = vcmask 64512
        %v1152 = vsel %vm1151, %v1146, -inf
        %1153 = vmax.xlane.f32.xlu0 %v1152
        %v1154 = vpop.xlane.xlu0 %1153
        %v1155 = vsub.f32 %v1146, %v1154
        %v1156 = vmul.f32 %v1155, 1.442695
        %v1157 = vpow.pop %v1156
        %v1158 = vsel %vm1151, %v1157, 0.0
        %1159 = vadd.xlane.f32.xlu0 %v1158
        %v1160 = vpop.xlane.xlu0 %1159
        %v1161 = vrcp.pop %v1160
        %v1162 = vmul.f32 %v1157, %v1161
        %v1163 = vpack.c.bf16 %v1162, %v1162
        %v1165 = vsel %vm1151, %v1163, 0
        %vm1167 = vcmask 1043456
        %v1169 = vsel %vm1167, %v1097, 0
        %1171 = vmatprep.subr.bf16.mxu0 0
        %1172 = vmatpush1.bf16.msra.mxu0 %v1169
        %1173 = vmatprep.subr.bf16.mxu0 0
        %1174 = vmatpush1.bf16.msra.mxu0 0
        %1175 = vmatprep.subr.bf16.mxu0 0
        %1176 = vmatpush1.bf16.msra.mxu0 0
        %1177 = vmatprep.subr.bf16.mxu0 0
        %1178 = vmatpush1.bf16.msra.mxu0 0
        %1179 = vmatprep.subr.bf16.mxu0 0
        %1180 = vmatpush1.bf16.msra.mxu0 0
        %1181 = vmatprep.subr.bf16.mxu0 0
        %1182 = vmatpush1.bf16.msra.mxu0 0
        %1183 = vmatprep.subr.bf16.mxu0 0
        %1184 = vmatpush1.bf16.msra.mxu0 0
        %1185 = vmatprep.subr.bf16.mxu0 0
        %1186 = vmatpush1.bf16.msra.mxu0 0
        %1187 = vmatprep.subr.bf16.mxu0 0
        %1188 = vmatpush1.bf16.msra.mxu0 0
        %1189 = vmatprep.subr.bf16.mxu0 0
        %1190 = vmatpush1.bf16.msra.mxu0 0
        %1191 = vmatprep.subr.bf16.mxu0 0
        %1192 = vmatpush1.bf16.msra.mxu0 0
        %1193 = vmatprep.subr.bf16.mxu0 0
        %1194 = vmatpush1.bf16.msra.mxu0 0
        %1195 = vmatprep.subr.bf16.mxu0 0
        %1196 = vmatpush1.bf16.msra.mxu0 0
        %1197 = vmatprep.subr.bf16.mxu0 0
        %1198 = vmatpush1.bf16.msra.mxu0 0
        %1199 = vmatprep.subr.bf16.mxu0 0
        %1200 = vmatpush1.bf16.msra.mxu0 0
        %1201 = vmatprep.subr.bf16.mxu0 0
        %1202 = vmatpush1.bf16.msra.mxu0 0
        %1203 = vmatprep.mubr.bf16.mxu0 0
        %1204 = vmatmul.mubr.bf16.gmra.mrb[0].mxu0 %v1165
        %v1205 = vpop.f32.mrb[0].mxu0
        %v1206 = vadd.f32 0.0, %v1205
        %v1207 = vpop.f32.mrb[0].mxu0
        %v1208 = vpop.f32.mrb[0].mxu0
        %v1209 = vpop.f32.mrb[0].mxu0
        %1210 = vdwg.mxu0
        %1212 = vrot.lane.b32.xlu0 %v969, 112
        %v1213 = vpop.permute.xlu0 %1212
        %1215 = vrot.lane.b32.xlu0 %v1033, 112
        %v1216 = vpop.permute.xlu0 %1215
        %v1218 = vsel %vm1104, %v1213, 0
        %v1221 = vsel %vm1104, %v1216, 0
        %1223 = vmatprep.subr.bf16.mxu0 0
        %1224 = vmatpush1.bf16.xpose.msra.mxu0 %v1221
        %1225 = vmatprep.subr.bf16.mxu0 0
        %1226 = vmatpush1.bf16.xpose.msra.mxu0 0
        %1227 = vmatprep.subr.bf16.mxu0 0
        %1228 = vmatpush1.bf16.xpose.msra.mxu0 0
        %1229 = vmatprep.subr.bf16.mxu0 0
        %1230 = vmatpush1.bf16.xpose.msra.mxu0 0
        %1231 = vmatprep.subr.bf16.mxu0 0
        %1232 = vmatpush1.bf16.xpose.msra.mxu0 0
        %1233 = vmatprep.subr.bf16.mxu0 0
        %1234 = vmatpush1.bf16.xpose.msra.mxu0 0
        %1235 = vmatprep.subr.bf16.mxu0 0
        %1236 = vmatpush1.bf16.xpose.msra.mxu0 0
        %1237 = vmatprep.subr.bf16.mxu0 0
        %1238 = vmatpush1.bf16.xpose.msra.mxu0 0
        %1239 = vmatprep.subr.bf16.mxu0 0
        %1240 = vmatpush1.bf16.xpose.msra.mxu0 0
        %1241 = vmatprep.subr.bf16.mxu0 0
        %1242 = vmatpush1.bf16.xpose.msra.mxu0 0
        %1243 = vmatprep.subr.bf16.mxu0 0
        %1244 = vmatpush1.bf16.xpose.msra.mxu0 0
        %1245 = vmatprep.subr.bf16.mxu0 0
        %1246 = vmatpush1.bf16.xpose.msra.mxu0 0
        %1247 = vmatprep.subr.bf16.mxu0 0
        %1248 = vmatpush1.bf16.xpose.msra.mxu0 0
        %1249 = vmatprep.subr.bf16.mxu0 0
        %1250 = vmatpush1.bf16.xpose.msra.mxu0 0
        %1251 = vmatprep.subr.bf16.mxu0 0
        %1252 = vmatpush1.bf16.xpose.msra.mxu0 0
        %1253 = vmatprep.subr.bf16.mxu0 0
        %1254 = vmatpush1.bf16.xpose.msra.mxu0 0
        %1255 = vmatprep.mubr.bf16.mxu0 0
        %1256 = vmatmul.mubr.bf16.gmra.mrb[0].mxu0 %v1218
        %v1257 = vpop.f32.mrb[0].mxu0
        %v1258 = vadd.f32 %v1102, %v1257
        %v1259 = vpop.f32.mrb[0].mxu0
        %v1260 = vpop.f32.mrb[0].mxu0
        %v1261 = vpop.f32.mrb[0].mxu0
        %1262 = vdwg.mxu0
        %v1263 = vsel %vm1151, %v1258, -inf
        %1264 = vmax.xlane.f32.xlu0 %v1263
        %v1265 = vpop.xlane.xlu0 %1264
        %v1266 = vsub.f32 %v1258, %v1265
        %v1267 = vmul.f32 %v1266, 1.442695
        %v1268 = vpow.pop %v1267
        %v1269 = vsel %vm1151, %v1268, 0.0
        %1270 = vadd.xlane.f32.xlu0 %v1269
        %v1271 = vpop.xlane.xlu0 %1270
        %v1272 = vrcp.pop %v1271
        %v1273 = vmul.f32 %v1268, %v1272
        %v1274 = vpack.c.bf16 %v1273, %v1273
        %1276 = vrot.lane.b32.xlu0 %v1097, 112
        %v1277 = vpop.permute.xlu0 %1276
        %v1279 = vsel %vm1151, %v1274, 0
        %v1282 = vsel %vm1167, %v1277, 0
        %1284 = vmatprep.subr.bf16.mxu0 0
        %1285 = vmatpush1.bf16.msra.mxu0 %v1282
        %1286 = vmatprep.subr.bf16.mxu0 0
        %1287 = vmatpush1.bf16.msra.mxu0 0
        %1288 = vmatprep.subr.bf16.mxu0 0
        %1289 = vmatpush1.bf16.msra.mxu0 0
        %1290 = vmatprep.subr.bf16.mxu0 0
        %1291 = vmatpush1.bf16.msra.mxu0 0
        %1292 = vmatprep.subr.bf16.mxu0 0
        %1293 = vmatpush1.bf16.msra.mxu0 0
        %1294 = vmatprep.subr.bf16.mxu0 0
        %1295 = vmatpush1.bf16.msra.mxu0 0
        %1296 = vmatprep.subr.bf16.mxu0 0
        %1297 = vmatpush1.bf16.msra.mxu0 0
        %1298 = vmatprep.subr.bf16.mxu0 0
        %1299 = vmatpush1.bf16.msra.mxu0 0
        %1300 = vmatprep.subr.bf16.mxu0 0
        %1301 = vmatpush1.bf16.msra.mxu0 0
        %1302 = vmatprep.subr.bf16.mxu0 0
        %1303 = vmatpush1.bf16.msra.mxu0 0
        %1304 = vmatprep.subr.bf16.mxu0 0
        %1305 = vmatpush1.bf16.msra.mxu0 0
        %1306 = vmatprep.subr.bf16.mxu0 0
        %1307 = vmatpush1.bf16.msra.mxu0 0
        %1308 = vmatprep.subr.bf16.mxu0 0
        %1309 = vmatpush1.bf16.msra.mxu0 0
        %1310 = vmatprep.subr.bf16.mxu0 0
        %1311 = vmatpush1.bf16.msra.mxu0 0
        %1312 = vmatprep.subr.bf16.mxu0 0
        %1313 = vmatpush1.bf16.msra.mxu0 0
        %1314 = vmatprep.subr.bf16.mxu0 0
        %1315 = vmatpush1.bf16.msra.mxu0 0
        %1316 = vmatprep.mubr.bf16.mxu0 0
        %1317 = vmatmul.mubr.bf16.gmra.mrb[0].mxu0 %v1279
        %v1318 = vpop.f32.mrb[0].mxu0
        %v1319 = vadd.f32 0.0, %v1318
        %v1320 = vpop.f32.mrb[0].mxu0
        %v1321 = vpop.f32.mrb[0].mxu0
        %v1322 = vpop.f32.mrb[0].mxu0
        %1323 = vdwg.mxu0
        %1325 = vrot.lane.b32.xlu0 %v1319, 16
        %v1326 = vpop.permute.xlu0 %1325
        %v1328 = vsel %vm1104, %v1206, %v1326
        %v1329 = vpack.c.bf16 %v1328, %v1328
        %vm1330 = vcmask 257024
        %1331 = vst.msk [vmem:[#allocation2] sm:$0xf] %vm1330, %v1329
        %v1332 = vld [vmem:[#allocation2] sm:$0xf]
        %v1333 = vld [vmem:[#allocation19] sm:$0xf]
        %v1334 = vld [vmem:[#allocation19 + $0x4] sm:$0xf]
        %v1335 = vld [vmem:[#allocation19 + $0x8] sm:$0xf]
        %v1336 = vld [vmem:[#allocation19 + $0xc] sm:$0xf]
        %v1337 = vld [vmem:[#allocation21] sm:$0x1]
        %v1339 = vlaneseq
        %v1340 = vshrl.u32 %v1339, 7
        %v1341 = vsub.s32 0, %v1340
        %v1342 = vrot.slane %v1337, %v1341
        %v1348 = vunpack.c.l.b16 %v1333
        %v1349 = vunpack.c.l.b16 %v1334
        %v1350 = vunpack.c.l.b16 %v1335
        %v1351 = vunpack.c.l.b16 %v1336
        %v1352 = vpack.c.b16 %v1349, %v1348
        %v1353 = vpack.c.b16 %v1351, %v1350
        %v1357 = vsel %vm925, %v1332, 0
        %1359 = vmatprep.subr.bf16.mxu0 0
        %1360 = vmatpush1.bf16.msra.mxu0 %v1352
        %1361 = vmatprep.subr.bf16.mxu0 0
        %1362 = vmatpush1.bf16.msra.mxu0 %v1353
        %1363 = vmatprep.subr.bf16.mxu0 0
        %1364 = vmatpush1.bf16.msra.mxu0 0
        %1365 = vmatprep.subr.bf16.mxu0 0
        %1366 = vmatpush1.bf16.msra.mxu0 0
        %1367 = vmatprep.subr.bf16.mxu0 0
        %1368 = vmatpush1.bf16.msra.mxu0 0
        %1369 = vmatprep.subr.bf16.mxu0 0
        %1370 = vmatpush1.bf16.msra.mxu0 0
        %1371 = vmatprep.subr.bf16.mxu0 0
        %1372 = vmatpush1.bf16.msra.mxu0 0
        %1373 = vmatprep.subr.bf16.mxu0 0
        %1374 = vmatpush1.bf16.msra.mxu0 0
        %1375 = vmatprep.subr.bf16.mxu0 0
        %1376 = vmatpush1.bf16.msra.mxu0 0
        %1377 = vmatprep.subr.bf16.mxu0 0
        %1378 = vmatpush1.bf16.msra.mxu0 0
        %1379 = vmatprep.subr.bf16.mxu0 0
        %1380 = vmatpush1.bf16.msra.mxu0 0
        %1381 = vmatprep.subr.bf16.mxu0 0
        %1382 = vmatpush1.bf16.msra.mxu0 0
        %1383 = vmatprep.subr.bf16.mxu0 0
        %1384 = vmatpush1.bf16.msra.mxu0 0
        %1385 = vmatprep.subr.bf16.mxu0 0
        %1386 = vmatpush1.bf16.msra.mxu0 0
        %1387 = vmatprep.subr.bf16.mxu0 0
        %1388 = vmatpush1.bf16.msra.mxu0 0
        %1389 = vmatprep.subr.bf16.mxu0 0
        %1390 = vmatpush1.bf16.msra.mxu0 0
        %1391 = vmatprep.mubr.bf16.mxu0 0
        %1392 = vmatmul.mubr.bf16.gmra.mrb[0].mxu0 %v1357
        %v1393 = vpop.f32.mrb[0].mxu0
        %v1394 = vadd.f32 %v1342, %v1393
        %v1395 = vpop.f32.mrb[0].mxu0
        %v1396 = vpop.f32.mrb[0].mxu0
        %v1397 = vpop.f32.mrb[0].mxu0
        %1398 = vdwg.mxu0
        %v1399 = vunpack.c.l.bf16 %v898
        %v1400 = vadd.f32 %v1399, %v1394
        %v1401 = vld [vmem:[#allocation22] sm:$0x1]
        %v1402 = vld [vmem:[#allocation24] sm:$0x1]
        %v1403 = vsel %vm925, %v1400, 0.0
        %1404 = vadd.xlane.f32.xlu0 %v1403
        %v1405 = vpop.xlane.xlu0 %1404
        %v1406 = vrcp.pop 32.0
        %v1407 = vmul.f32 %v1405, %v1406
        %v1408 = vsub.f32 %v1400, %v1407
        %v1409 = vmul.f32 %v1408, %v1408
        %v1410 = vsel %vm925, %v1409, 0.0
        %1411 = vadd.xlane.f32.xlu0 %v1410
        %v1412 = vpop.xlane.xlu0 %1411
        %v1413 = vmul.f32 %v1412, %v1406
        %v1414 = vadd.f32 %v1413, 1e-05
        %v1415 = vrsqrt.pop %v1414
        %v1416 = vmul.f32 %v1408, %v1415
        %v1418 = vlaneseq
        %v1419 = vshrl.u32 %v1418, 7
        %v1420 = vsub.s32 0, %v1419
        %v1421 = vrot.slane %v1401, %v1420
        %v1423 = vmul.f32 %v1416, %v1421
        %v1425 = vlaneseq
        %v1426 = vshrl.u32 %v1425, 7
        %v1427 = vsub.s32 0, %v1426
        %v1428 = vrot.slane %v1402, %v1427
        %v1430 = vadd.f32 %v1423, %v1428
        %1431 = vst.msk [vmem:[#allocation3] sm:$0xff] %vm925, %v1430
        %v1432 = vld [vmem:[#allocation3] sm:$0xff]
        %v1433 = vpack.c.bf16 %v1432, %v1432
        %v1434 = vld [vmem:[#allocation25] sm:$0xf]
        %v1435 = vld [vmem:[#allocation25 + $0x4] sm:$0xf]
        %v1436 = vld [vmem:[#allocation25 + $0x8] sm:$0xf]
        %v1437 = vld [vmem:[#allocation25 + $0xc] sm:$0xf]
        %v1438 = vld [vmem:[#allocation27] sm:$0x1]
        %v1440 = vlaneseq
        %v1441 = vshrl.u32 %v1440, 7
        %v1442 = vsub.s32 0, %v1441
        %v1443 = vrot.slane %v1438, %v1442
        %v1449 = vunpack.c.l.b16 %v1434
        %v1450 = vunpack.c.l.b16 %v1435
        %v1451 = vunpack.c.l.b16 %v1436
        %v1452 = vunpack.c.l.b16 %v1437
        %v1453 = vpack.c.b16 %v1450, %v1449
        %v1454 = vpack.c.b16 %v1452, %v1451
        %v1458 = vsel %vm925, %v1433, 0
        %1460 = vmatprep.subr.bf16.mxu0 0
        %1461 = vmatpush1.bf16.msra.mxu0 %v1453
        %1462 = vmatprep.subr.bf16.mxu0 0
        %1463 = vmatpush1.bf16.msra.mxu0 %v1454
        %1464 = vmatprep.subr.bf16.mxu0 0
        %1465 = vmatpush1.bf16.msra.mxu0 0
        %1466 = vmatprep.subr.bf16.mxu0 0
        %1467 = vmatpush1.bf16.msra.mxu0 0
        %1468 = vmatprep.subr.bf16.mxu0 0
        %1469 = vmatpush1.bf16.msra.mxu0 0
        %1470 = vmatprep.subr.bf16.mxu0 0
        %1471 = vmatpush1.bf16.msra.mxu0 0
        %1472 = vmatprep.subr.bf16.mxu0 0
        %1473 = vmatpush1.bf16.msra.mxu0 0
        %1474 = vmatprep.subr.bf16.mxu0 0
        %1475 = vmatpush1.bf16.msra.mxu0 0
        %1476 = vmatprep.subr.bf16.mxu0 0
        %1477 = vmatpush1.bf16.msra.mxu0 0
        %1478 = vmatprep.subr.bf16.mxu0 0
        %1479 = vmatpush1.bf16.msra.mxu0 0
        %1480 = vmatprep.subr.bf16.mxu0 0
        %1481 = vmatpush1.bf16.msra.mxu0 0
        %1482 = vmatprep.subr.bf16.mxu0 0
        %1483 = vmatpush1.bf16.msra.mxu0 0
        %1484 = vmatprep.subr.bf16.mxu0 0
        %1485 = vmatpush1.bf16.msra.mxu0 0
        %1486 = vmatprep.subr.bf16.mxu0 0
        %1487 = vmatpush1.bf16.msra.mxu0 0
        %1488 = vmatprep.subr.bf16.mxu0 0
        %1489 = vmatpush1.bf16.msra.mxu0 0
        %1490 = vmatprep.subr.bf16.mxu0 0
        %1491 = vmatpush1.bf16.msra.mxu0 0
        %1492 = vmatprep.mubr.bf16.mxu0 0
        %1493 = vmatmul.mubr.bf16.gmra.mrb[0].mxu0 %v1458
        %v1494 = vpop.f32.mrb[0].mxu0
        %v1495 = vadd.f32 %v1443, %v1494
        %v1496 = vpop.f32.mrb[0].mxu0
        %v1497 = vpop.f32.mrb[0].mxu0
        %v1498 = vpop.f32.mrb[0].mxu0
        %1499 = vdwg.mxu0
        %v1500 = vmul.f32 %v1495, 0.5
        %v1501 = vmul.f32 %v1495, 0.70710677
        %vm1502 = vcmp.ge.f32.partialorder %v1501, 0.0
        %v1503 = vsel %vm1502, 1.0, -1.0
        %v1504 = vand.u32 2147483647, %v1501
        %v1505 = vmul.f32 %v1504, 0.3275911
        %v1506 = vadd.f32 %v1505, 1.0
        %v1507 = vrcp.pop %v1506
        %v1508 = vmul.f32 %v1507, 1.0614054
        %v1509 = vadd.f32 %v1508, -1.4531521
        %v1510 = vmul.f32 %v1507, %v1509
        %v1511 = vadd.f32 %v1510, 1.4214138
        %v1512 = vmul.f32 %v1507, %v1511
        %v1513 = vadd.f32 %v1512, -0.28449672
        %v1514 = vmul.f32 %v1507, %v1513
        %v1515 = vadd.f32 %v1514, 0.2548296
        %v1516 = vmul.f32 %v1507, %v1515
        %v1517 = vsub.f32 0.0, %v1504
        %v1518 = vmul.f32 %v1517, %v1504
        %v1519 = vmul.f32 %v1518, 1.442695
        %v1520 = vpow.pop %v1519
        %v1521 = vmul.f32 %v1516, %v1520
        %v1522 = vsub.f32 1.0, %v1521
        %v1523 = vmul.f32 %v1503, %v1522
        %v1524 = vadd.f32 %v1523, 1.0
        %v1525 = vmul.f32 %v1500, %v1524
        %v1526 = vpack.c.bf16 %v1525, %v1525
        %v1527 = vld [vmem:[#allocation28] sm:$0xf]
        %v1528 = vld [vmem:[#allocation28 + $0x4] sm:$0xf]
        %v1529 = vld [vmem:[#allocation28 + $0x8] sm:$0xf]
        %v1530 = vld [vmem:[#allocation28 + $0xc] sm:$0xf]
        %v1531 = vld [vmem:[#allocation28 + $0x10] sm:$0xf]
        %v1532 = vld [vmem:[#allocation28 + $0x14] sm:$0xf]
        %v1533 = vld [vmem:[#allocation28 + $0x18] sm:$0xf]
        %v1534 = vld [vmem:[#allocation28 + $0x1c] sm:$0xf]
        %v1535 = vld [vmem:[#allocation30] sm:$0x1]
        %v1537 = vlaneseq
        %v1538 = vshrl.u32 %v1537, 7
        %v1539 = vsub.s32 0, %v1538
        %v1540 = vrot.slane %v1535, %v1539
        %v1550 = vunpack.c.l.b16 %v1527
        %v1551 = vunpack.c.l.b16 %v1528
        %v1552 = vunpack.c.l.b16 %v1529
        %v1553 = vunpack.c.l.b16 %v1530
        %v1554 = vunpack.c.l.b16 %v1531
        %v1555 = vunpack.c.l.b16 %v1532
        %v1556 = vunpack.c.l.b16 %v1533
        %v1557 = vunpack.c.l.b16 %v1534
        %v1558 = vpack.c.b16 %v1551, %v1550
        %v1559 = vpack.c.b16 %v1553, %v1552
        %v1560 = vpack.c.b16 %v1555, %v1554
        %v1561 = vpack.c.b16 %v1557, %v1556
        %vm1566 = vcmask 523264
        %v1568 = vsel %vm1566, %v1526, 0
        %1570 = vmatprep.subr.bf16.mxu0 0
        %1571 = vmatpush1.bf16.msra.mxu0 %v1558
        %1572 = vmatprep.subr.bf16.mxu0 0
        %1573 = vmatpush1.bf16.msra.mxu0 %v1559
        %1574 = vmatprep.subr.bf16.mxu0 0
        %1575 = vmatpush1.bf16.msra.mxu0 %v1560
        %1576 = vmatprep.subr.bf16.mxu0 0
        %1577 = vmatpush1.bf16.msra.mxu0 %v1561
        %1578 = vmatprep.subr.bf16.mxu0 0
        %1579 = vmatpush1.bf16.msra.mxu0 0
        %1580 = vmatprep.subr.bf16.mxu0 0
        %1581 = vmatpush1.bf16.msra.mxu0 0
        %1582 = vmatprep.subr.bf16.mxu0 0
        %1583 = vmatpush1.bf16.msra.mxu0 0
        %1584 = vmatprep.subr.bf16.mxu0 0
        %1585 = vmatpush1.bf16.msra.mxu0 0
        %1586 = vmatprep.subr.bf16.mxu0 0
        %1587 = vmatpush1.bf16.msra.mxu0 0
        %1588 = vmatprep.subr.bf16.mxu0 0
        %1589 = vmatpush1.bf16.msra.mxu0 0
        %1590 = vmatprep.subr.bf16.mxu0 0
        %1591 = vmatpush1.bf16.msra.mxu0 0
        %1592 = vmatprep.subr.bf16.mxu0 0
        %1593 = vmatpush1.bf16.msra.mxu0 0
        %1594 = vmatprep.subr.bf16.mxu0 0
        %1595 = vmatpush1.bf16.msra.mxu0 0
        %1596 = vmatprep.subr.bf16.mxu0 0
        %1597 = vmatpush1.bf16.msra.mxu0 0
        %1598 = vmatprep.subr.bf16.mxu0 0
        %1599 = vmatpush1.bf16.msra.mxu0 0
        %1600 = vmatprep.subr.bf16.mxu0 0
        %1601 = vmatpush1.bf16.msra.mxu0 0
        %1602 = vmatprep.mubr.bf16.mxu0 0
        %1603 = vmatmul.mubr.bf16.gmra.mrb[0].mxu0 %v1568
        %v1604 = vpop.f32.mrb[0].mxu0
        %v1605 = vadd.f32 %v1540, %v1604
        %v1606 = vpop.f32.mrb[0].mxu0
        %v1607 = vpop.f32.mrb[0].mxu0
        %v1608 = vpop.f32.mrb[0].mxu0
        %1609 = vdwg.mxu0
        %v1610 = vadd.f32 %v1432, %v1605
        %v1611 = vld [vmem:[#allocation31] sm:$0x1]
        %v1612 = vld [vmem:[#allocation33] sm:$0x1]
        %v1613 = vsel %vm925, %v1610, 0.0
        %1614 = vadd.xlane.f32.xlu0 %v1613
        %v1615 = vpop.xlane.xlu0 %1614
        %v1616 = vmul.f32 %v1615, %v1406
        %v1617 = vsub.f32 %v1610, %v1616
        %v1618 = vmul.f32 %v1617, %v1617
        %v1619 = vsel %vm925, %v1618, 0.0
        %1620 = vadd.xlane.f32.xlu0 %v1619
        %v1621 = vpop.xlane.xlu0 %1620
        %v1622 = vmul.f32 %v1621, %v1406
        %v1623 = vadd.f32 %v1622, 1e-05
        %v1624 = vrsqrt.pop %v1623
        %v1625 = vmul.f32 %v1617, %v1624
        %v1627 = vlaneseq
        %v1628 = vshrl.u32 %v1627, 7
        %v1629 = vsub.s32 0, %v1628
        %v1630 = vrot.slane %v1611, %v1629
        %v1632 = vmul.f32 %v1625, %v1630
        %v1634 = vlaneseq
        %v1635 = vshrl.u32 %v1634, 7
        %v1636 = vsub.s32 0, %v1635
        %v1637 = vrot.slane %v1612, %v1636
        %v1639 = vadd.f32 %v1632, %v1637
        %v1640 = vld [vmem:[%s770] sm:$0xff]
        %1642 = vset.pattern.permute.xlu0 0
        %1643 = vperm.xlu0 %1642, %v1640
        %v1644 = vpop.permute.xlu0 %1643
        %v1646 = vmul.f32 %v1639, %v1644
        %v1647 = vsel %vm925, %v1646, 0.0
        %v1648 = vrot.slane %v1647, 4
        %v1649 = vadd.f32 %v1647, %v1648
        %v1650 = vrot.slane %v1649, 2
        %v1651 = vadd.f32 %v1649, %v1650
        %v1652 = vrot.slane %v1651, 1
        %v1653 = vadd.f32 %v1651, %v1652
        %vm1654 = vcmask 7168
        %v1655 = vsel %vm1654, %v1640, 0.0
        %v1656 = vrot.slane %v1655, 4
        %v1657 = vadd.f32 %v1655, %v1656
        %v1658 = vrot.slane %v1657, 2
        %v1659 = vadd.f32 %v1657, %v1658
        %v1660 = vrot.slane %v1659, 1
        %v1661 = vadd.f32 %v1659, %v1660
        %v1662 = vmax.f32 %v1661, 1e-09
        %v1663 = vrcp.pop %v1662
        %1665 = vset.pattern.permute.xlu0 0
        %1666 = vperm.xlu0 %1665, %v1663
        %v1667 = vpop.permute.xlu0 %1666
        %v1669 = vmul.f32 %v1653, %v1667
        %vm1670 = vcmask 253952
        %1671 = vst.msk [vmem:[%s896] sm:$0x1] %vm1670, %v1669
        %s1672 = sand.u32 %s469, 1
        %s1673 = scalar_lea.sflag [#allocation6], %s1672
        %s1674 = sand.u32 %s469, 1
        %s1675 = scalar_lea.vmem [#allocation34], %s1674
        // Predicated region
        $region173: #{tpu_custom_call.1} parent=95 // pred_check
          %p1676 = pneg %p479
        $region174: #{tpu_custom_call.1} parent=95 // pred_check_branch
          %1678 = sbr.rel (%p1676) target = $region176
        $region175: #{tpu_custom_call.1} parent=95 // pred_region
          %s1680 = ssub.s32 16, 16
          %1681 = vsyncadd %s1673, %s1680
          %s1682 = smul.addr %s47, 16
          %s1683 = scalar_lea.hbm %s19, %s1682
          %s1685 = sshll.u32 %s1675, 4
          %s1686 = int_to_ptr.vmem [resolvable:$true] %s1685
          %1688 = dma.vmem_to_hbm [thread:$0]  %s1686, 16, %s1683, %s1673
        $region176: #{tpu_custom_call.1} parent=95 // pred_fallthru
          _
      $region96: #{tpu_custom_call.1} parent=5 // pred_fallthru
        _
      %p1689 = scmp.le.s32.totalorder 2, %s42
      // Predicated region
      $region177: #{tpu_custom_call.1} parent=5 // pred_check
        %p1690 = pneg %p1689
      $region178: #{tpu_custom_call.1} parent=5 // pred_check_branch
        %1692 = sbr.rel (%p1690) target = $region180
      $region179: #{tpu_custom_call.1} parent=5 // pred_region
        %s1693 = ssub.s32 %s42, 2
        // Predicated region
        $region181: #{tpu_custom_call.1} parent=179 // pred_check
          %p1694 = pneg %p485
        $region182: #{tpu_custom_call.1} parent=179 // pred_check_branch
          %1696 = sbr.rel (%p1694) target = $region184
        $region183: #{tpu_custom_call.1} parent=179 // pred_region
          %s1697 = sand.u32 %s470, 1
          %s1698 = scalar_lea.sflag [#allocation6], %s1697
          %s1699 = sand.u32 %s470, 1
          %s1700 = scalar_lea.vmem [#allocation34], %s1699
          %1701 = dma.done %s1698, 16
        $region184: #{tpu_custom_call.1} parent=179 // pred_fallthru
          _
      $region180: #{tpu_custom_call.1} parent=5 // pred_fallthru
        _
    $region6: #{tpu_custom_call.1} parent=1 // loop_footer
      %s46 = sadd.s32 1, %s42
    $region7: #{tpu_custom_call.1} parent=1 // loop_footer_branch
      %41 = sbr.rel target = $region3
    $region8: #{tpu_custom_call.1} parent=1 // loop_exit
      _
    %1702 = vsyncpa [#allocation5], 1
    %s1703 = scalar_lea.sflag [#allocation5], 1
    %1704 = vsyncpa %s1703, 1
    %1705 = vsyncpa [#allocation8], 1
    %s1706 = scalar_lea.sflag [#allocation8], 1
    %1707 = vsyncpa %s1706, 1
    %1708 = vsyncpa [#allocation11], 1
    %1709 = vsyncpa [#allocation14], 1
    %1710 = vsyncpa [#allocation17], 1
    %1711 = vsyncpa [#allocation20], 1
    %1712 = vsyncpa [#allocation23], 1
    %1713 = vsyncpa [#allocation26], 1
    %1714 = vsyncpa [#allocation29], 1
    %1715 = vsyncpa [#allocation32], 1
    %1716 = vsyncpa [#allocation6], 1
    %s1717 = scalar_lea.sflag [#allocation6], 1
    %1718 = vsyncpa %s1717, 1

</llo_original>
